<compile_context>
chip_gen: v6e
topology: v6e:2x2x1
jax: 0.10.0
libtpu: 0.0.40
codegen_flags: <defaults>
</compile_context>

<pallas_src>
import functools

import jax
import jax.numpy as jnp
from jax.experimental import pallas as pl
from jax.experimental.pallas import tpu as pltpu


def attention_kernel(dec_ref, enc_ref,
                     wq_ref, bq_ref, wk_ref, bk_ref, ws_ref,
                     ctx_ref, wts_ref, *, s_valid):
    # dec_ref: (Bt, Hp)     batch tile of decoder states
    # enc_ref: (Bt, Sp, Hp) batch tile of encoder outputs (Sp % 8 == 0)
    Bt, Sp, Hp = enc_ref.shape
    dec = dec_ref[...]
    enc = enc_ref[...]

    # query_proj for the whole batch tile: (Bt, Hp) @ (Hp, Hp) on the MXU
    q = jnp.dot(dec, wq_ref[...], preferred_element_type=jnp.float32) + bq_ref[...]

    # key_proj fused into one large MXU matmul: (Bt*Sp, Hp) @ (Hp, Hp).
    # Sp is a multiple of 8 so these reshapes are layout no-ops (no VMEM copy).
    k = jnp.dot(enc.reshape(Bt * Sp, Hp), wk_ref[...],
                preferred_element_type=jnp.float32) + bk_ref[...]
    k = k.reshape(Bt, Sp, Hp)

    # tanh(q + k), broadcasting q over the sequence axis (EUP)
    t = jnp.tanh(q[:, None, :] + k)                              # (Bt, Sp, Hp)

    # score_proj (out_features = 1): VPU multiply + lane reduce (avoids an
    # N=1 MXU matmul) — scores come out lane-dense as (Bt, Sp).
    # The scalar score bias is dropped: softmax is shift-invariant, so the
    # returned weights (and hence the context) are unchanged.
    scores = jnp.sum(t * ws_ref[...], axis=-1)                   # (Bt, Sp)

    # mask sequence padding so padded positions get exactly zero weight
    lane = jax.lax.broadcasted_iota(jnp.int32, (Bt, Sp), 1)
    scores = jnp.where(lane < s_valid, scores, -1e30)

    # numerically stable softmax over the sequence axis (lane axis);
    # denominator reciprocal on the EUP (approx, ~1e-4 rel error).
    m = jnp.max(scores, axis=-1, keepdims=True)
    e = jnp.exp(scores - m)
    w = e * pl.reciprocal(jnp.sum(e, axis=-1, keepdims=True), approx=True)

    # context = sum_s w[b,s] * enc[b,s,:]  — VPU multiply + sublane reduce,
    # replacing the batched M=1 MXU matmul.
    ctx = jnp.sum(w[:, :, None] * enc, axis=1)                   # (Bt, Hp)

    ctx_ref[...] = ctx.astype(ctx_ref.dtype)                     # (Bt, Hp) dense store
    wts_ref[...] = w.astype(wts_ref.dtype)                       # (Bt, Sp) dense store


def attention_pallas(decoder_state, encoder_outputs, params, block_b=None):
    B, H = decoder_state.shape
    _, S, _ = encoder_outputs.shape
    f32 = jnp.float32

    Hp = max(128, ((H + 127) // 128) * 128)   # lane-pad hidden dim
    Sp = ((S + 7) // 8) * 8                   # sublane-align sequence (free reshapes)

    # ---- generation-aware VMEM budget & batch-tile selection -------------
    try:
        vmem_cap = pltpu.get_tpu_info().vmem_capacity_bytes
    except Exception:
        vmem_cap = 128 * 1024 * 1024
    # ~100 MiB usable on 128 MiB parts (v5e/v6e), ~48 MiB on 64 MiB parts (v7x)
    vmem_budget = min(int(vmem_cap * 0.75), 100 * 1024 * 1024)

    # Rough per-batch-row VMEM (f32): double-buffered enc tile + k/t temps
    # + dec/ctx/wts blocks.  Fixed: the two Hp x Hp weight matrices + vectors.
    per_row = (5 * Sp * Hp + 4 * Hp + 2 * Sp) * 4
    fixed = (2 * 2 * Hp * Hp + 3 * Hp) * 4

    Bp8 = ((B + 7) // 8) * 8                  # sublane-dense batch floor
    if block_b is None:
        bt = max(8, (vmem_budget - fixed) // per_row)
        bt = max(8, (bt // 8) * 8)
        bt = min(bt, 512)                     # diminishing returns past ~512 rows
    else:
        bt = max(8, ((block_b + 7) // 8) * 8)
    Bt = min(bt, Bp8)
    # v7x has 2 TensorCores: keep >= 2 parallel grid steps when the batch allows
    if Bp8 >= 16 and Bp8 // Bt < 2:
        Bt = max(8, ((Bp8 // 2) // 8) * 8)
    Bp = ((Bp8 + Bt - 1) // Bt) * Bt

    ph, pb, ps = Hp - H, Bp - B, Sp - S

    dec_p = jnp.pad(decoder_state.astype(f32), ((0, pb), (0, ph)))
    enc_p = jnp.pad(encoder_outputs.astype(f32), ((0, pb), (0, ps), (0, ph)))

    # nn.Linear stores W as (out, in) and computes x @ W.T + b.
    # Pre-transpose to (in, out) and zero-pad to (Hp, Hp) so the kernel does
    # plain x @ W; zero padding keeps the math identical.
    wq_t = jnp.pad(params["wq"].astype(f32).T, ((0, ph), (0, ph)))
    wk_t = jnp.pad(params["wk"].astype(f32).T, ((0, ph), (0, ph)))
    bq = jnp.pad(params["bq"].astype(f32).reshape(1, H), ((0, 0), (0, ph)))
    bk = jnp.pad(params["bk"].astype(f32).reshape(1, H), ((0, 0), (0, ph)))
    ws = jnp.pad(params["ws"].astype(f32).reshape(1, H), ((0, 0), (0, ph)))
    # (score bias bs intentionally not passed: softmax shift-invariance)

    # TODO(synk): for very large S (enc tile no longer fits VMEM, hit first on
    # v7x's 64 MiB), add a second "arbitrary" grid axis over S with an
    # online-softmax (running max/sum/acc) in VMEM scratch.

    def const_spec(shape, single):
        idx = lambda i, _n=len(shape): (0,) * _n
        if single:
            return pl.BlockSpec(shape, idx, pipeline_mode=pl.Buffered(1))
        return pl.BlockSpec(shape, idx)

    def run(single_buffer_weights):
        in_specs = [
            pl.BlockSpec((Bt, Hp), lambda i: (i, 0)),            # decoder_state
            pl.BlockSpec((Bt, Sp, Hp), lambda i: (i, 0, 0)),     # encoder_outputs
            const_spec((Hp, Hp), single_buffer_weights),          # Wq^T
            const_spec((1, Hp), single_buffer_weights),           # bq
            const_spec((Hp, Hp), single_buffer_weights),          # Wk^T
            const_spec((1, Hp), single_buffer_weights),           # bk
            const_spec((1, Hp), single_buffer_weights),           # Ws row
        ]
        return pl.pallas_call(
            functools.partial(attention_kernel, s_valid=S),
            out_shape=(
                jax.ShapeDtypeStruct((Bp, Hp), f32),   # context  (lane/sublane dense)
                jax.ShapeDtypeStruct((Bp, Sp), f32),   # weights  (lane dense over S)
            ),
            grid_spec=pltpu.PrefetchScalarGridSpec(
                num_scalar_prefetch=0,
                grid=(Bp // Bt,),
                in_specs=in_specs,
                out_specs=[
                    pl.BlockSpec((Bt, Hp), lambda i: (i, 0)),
                    pl.BlockSpec((Bt, Sp), lambda i: (i, 0)),
                ],
            ),
            compiler_params=pltpu.CompilerParams(
                dimension_semantics=("parallel",),
                vmem_limit_bytes=vmem_budget,
            ),
        )(dec_p, enc_p, wq_t, bq, wk_t, bk, ws)

    try:
        ctx_p, wts_p = run(True)
    except Exception:
        # Fallback for jax versions where BlockSpec(pipeline_mode=...) or
        # single-buffering is not supported: default double-buffered weights.
        ctx_p, wts_p = run(False)

    context = ctx_p[:B, :H][:, None, :]    # (B, 1, H)  — matches torch.bmm output
    weights = wts_p[:B, :S, None]          # (B, S, 1)  — matches F.softmax(scores, dim=1)
    return context, weights


def attention_reference(decoder_state, encoder_outputs, params):
    """Plain-JAX mirror of the PyTorch forward, for verification."""
    q = decoder_state @ params["wq"].T + params["bq"]                # (B, H)
    k = encoder_outputs @ params["wk"].T + params["bk"]              # (B, S, H)
    t = jnp.tanh(q[:, None, :] + k)                                  # (B, S, H)
    scores = t @ params["ws"].T + params["bs"]                       # (B, S, 1)
    weights = jax.nn.softmax(scores, axis=1)                         # (B, S, 1)
    context = jnp.einsum("bsk,bsh->bkh", weights, encoder_outputs)   # (B, 1, H)
    return context, weights


if __name__ == "__main__":
    B, S, H = 2, 8, 32
    key = jax.random.PRNGKey(0)
    k_dec, k_enc, k_wq, k_bq, k_wk, k_bk, k_ws, k_bs = jax.random.split(key, 8)

    decoder_state = jax.random.normal(k_dec, (B, H), dtype=jnp.float32)
    encoder_outputs = jax.random.normal(k_enc, (B, S, H), dtype=jnp.float32)

    # Deterministic parameter init (PyTorch Linear weight shapes: (out, in)).
    params = {
        "wq": jax.random.normal(k_wq, (H, H), dtype=jnp.float32) * 0.1,
        "bq": jax.random.normal(k_bq, (H,), dtype=jnp.float32) * 0.1,
        "wk": jax.random.normal(k_wk, (H, H), dtype=jnp.float32) * 0.1,
        "bk": jax.random.normal(k_bk, (H,), dtype=jnp.float32) * 0.1,
        "ws": jax.random.normal(k_ws, (1, H), dtype=jnp.float32) * 0.1,
        "bs": jax.random.normal(k_bs, (1,), dtype=jnp.float32) * 0.1,
    }

    ctx, wts = attention_pallas(decoder_state, encoder_outputs, params)
    jax.block_until_ready((ctx, wts))

    ctx_ref, wts_ref = attention_reference(decoder_state, encoder_outputs, params)
    # Tolerance accounts for the EUP approximate reciprocal in the softmax
    # denominator (relative error ~1e-4); everything else is exact f32
    # (the dropped score bias is mathematically inert under softmax).
    assert ctx.shape == (B, 1, H) and wts.shape == (B, S, 1)
    assert jnp.allclose(ctx, ctx_ref, atol=1e-3, rtol=1e-3), "context mismatch"
    assert jnp.allclose(wts, wts_ref, atol=1e-3, rtol=1e-3), "weights mismatch"

    print("KERNEL_OK")
</pallas_src>

<mosaic_0001>
module attributes {stable_mosaic.version = 11 : i64} {
  func.func @attention_kernel(%arg0: i32, %arg1: memref<8x128xf32, #tpu.memory_space<vmem>>, %arg2: memref<8x8x128xf32, #tpu.memory_space<vmem>>, %arg3: memref<128x128xf32, #tpu.memory_space<vmem>>, %arg4: memref<1x128xf32, #tpu.memory_space<vmem>>, %arg5: memref<128x128xf32, #tpu.memory_space<vmem>>, %arg6: memref<1x128xf32, #tpu.memory_space<vmem>>, %arg7: memref<1x128xf32, #tpu.memory_space<vmem>>, %arg8: memref<8x128xf32, #tpu.memory_space<vmem>>, %arg9: memref<8x8xf32, #tpu.memory_space<vmem>>) attributes {dimension_semantics = [#tpu.dimension_semantics<parallel>], iteration_bounds = array<i64: 1>, scalar_prefetch = 0 : i64, scratch_operands = 0 : i64, tpu.core_type = #tpu.core_type<tc>, window_params = [{transform_indices = @transform_0, window_bounds = array<i64: 8, 128>}, {transform_indices = @transform_1, window_bounds = array<i64: 8, 8, 128>}, {pipeline_mode = #tpu.pipeline_mode<synchronous>, transform_indices = @transform_2, window_bounds = array<i64: 128, 128>}, {pipeline_mode = #tpu.pipeline_mode<synchronous>, transform_indices = @transform_3, window_bounds = array<i64: 1, 128>}, {pipeline_mode = #tpu.pipeline_mode<synchronous>, transform_indices = @transform_4, window_bounds = array<i64: 128, 128>}, {pipeline_mode = #tpu.pipeline_mode<synchronous>, transform_indices = @transform_5, window_bounds = array<i64: 1, 128>}, {pipeline_mode = #tpu.pipeline_mode<synchronous>, transform_indices = @transform_6, window_bounds = array<i64: 1, 128>}, {transform_indices = @transform_7, window_bounds = array<i64: 8, 128>}, {transform_indices = @transform_8, window_bounds = array<i64: 8, 8>}]} {
    %c0 = arith.constant 0 : index
    %c0_0 = arith.constant 0 : index
    %0 = vector.load %arg1[%c0, %c0_0] : memref<8x128xf32, #tpu.memory_space<vmem>>, vector<8x128xf32>
    %c0_1 = arith.constant 0 : index
    %c0_2 = arith.constant 0 : index
    %c0_3 = arith.constant 0 : index
    %1 = vector.load %arg2[%c0_1, %c0_2, %c0_3] : memref<8x8x128xf32, #tpu.memory_space<vmem>>, vector<8x8x128xf32>
    %c0_4 = arith.constant 0 : index
    %c0_5 = arith.constant 0 : index
    %2 = vector.load %arg3[%c0_4, %c0_5] : memref<128x128xf32, #tpu.memory_space<vmem>>, vector<128x128xf32>
    %cst = arith.constant dense<0.000000e+00> : vector<8x128xf32>
    %3 = tpu.matmul %0, %2, %cst {dimension_numbers = #tpu.dot_dimension_numbers<[1], [0], [0], [1], [0, 0, 1, 1], [], []>} : vector<8x128xf32>, vector<128x128xf32>, vector<8x128xf32> -> vector<8x128xf32>
    %c0_6 = arith.constant 0 : index
    %c0_7 = arith.constant 0 : index
    %4 = vector.load %arg4[%c0_6, %c0_7] : memref<1x128xf32, #tpu.memory_space<vmem>>, vector<1x128xf32>
    %5 = vector.broadcast %4 : vector<1x128xf32> to vector<8x128xf32>
    %6 = arith.addf %3, %5 : vector<8x128xf32>
    %7 = vector.shape_cast %1 : vector<8x8x128xf32> to vector<64x128xf32>
    %c0_8 = arith.constant 0 : index
    %c0_9 = arith.constant 0 : index
    %8 = vector.load %arg5[%c0_8, %c0_9] : memref<128x128xf32, #tpu.memory_space<vmem>>, vector<128x128xf32>
    %cst_10 = arith.constant dense<0.000000e+00> : vector<64x128xf32>
    %9 = tpu.matmul %7, %8, %cst_10 {dimension_numbers = #tpu.dot_dimension_numbers<[1], [0], [0], [1], [0, 0, 1, 1], [], []>} : vector<64x128xf32>, vector<128x128xf32>, vector<64x128xf32> -> vector<64x128xf32>
    %c0_11 = arith.constant 0 : index
    %c0_12 = arith.constant 0 : index
    %10 = vector.load %arg6[%c0_11, %c0_12] : memref<1x128xf32, #tpu.memory_space<vmem>>, vector<1x128xf32>
    %11 = vector.broadcast %10 : vector<1x128xf32> to vector<64x128xf32>
    %12 = arith.addf %9, %11 : vector<64x128xf32>
    %13 = vector.shape_cast %12 : vector<64x128xf32> to vector<8x8x128xf32>
    %14 = vector.shape_cast %6 : vector<8x128xf32> to vector<8x1x128xf32>
    %15 = vector.broadcast %14 : vector<8x1x128xf32> to vector<8x8x128xf32>
    %16 = arith.addf %15, %13 : vector<8x8x128xf32>
    %17 = math.tanh %16 : vector<8x8x128xf32>
    %c0_13 = arith.constant 0 : index
    %c0_14 = arith.constant 0 : index
    %18 = vector.load %arg7[%c0_13, %c0_14] : memref<1x128xf32, #tpu.memory_space<vmem>>, vector<1x128xf32>
    %19 = vector.shape_cast %18 : vector<1x128xf32> to vector<1x1x128xf32>
    %20 = vector.broadcast %19 : vector<1x1x128xf32> to vector<8x8x128xf32>
    %21 = arith.mulf %17, %20 : vector<8x8x128xf32>
    %cst_15 = arith.constant dense<0.000000e+00> : vector<8x8xf32>
    %22 = vector.multi_reduction <add>, %21, %cst_15 [2] : vector<8x8x128xf32> to vector<8x8xf32>
    %23 = tpu.iota {dimensions = array<i32: 1>} : vector<8x8xi32>
    %c8_i32 = arith.constant 8 : i32
    %24 = vector.broadcast %c8_i32 : i32 to vector<8x8xi32>
    %25 = arith.cmpi slt, %23, %24 : vector<8x8xi32>
    %cst_16 = arith.constant -1.000000e+30 : f32
    %26 = vector.broadcast %cst_16 : f32 to vector<8x8xf32>
    %27 = arith.select %25, %22, %26 : vector<8x8xi1>, vector<8x8xf32>
    %cst_17 = arith.constant dense<0xFF800000> : vector<8xf32>
    %28 = vector.multi_reduction <maximumf>, %27, %cst_17 [1] : vector<8x8xf32> to vector<8xf32>
    %29 = vector.shape_cast %28 : vector<8xf32> to vector<8x1xf32>
    %30 = vector.broadcast %29 : vector<8x1xf32> to vector<8x8xf32>
    %31 = arith.subf %27, %30 : vector<8x8xf32>
    %32 = math.exp %31 : vector<8x8xf32>
    %cst_18 = arith.constant dense<0.000000e+00> : vector<8xf32>
    %33 = vector.multi_reduction <add>, %32, %cst_18 [1] : vector<8x8xf32> to vector<8xf32>
    %34 = vector.shape_cast %33 : vector<8xf32> to vector<8x1xf32>
    %35 = tpu.reciprocal %34 {approx = true} : vector<8x1xf32> -> vector<8x1xf32>
    %36 = vector.broadcast %35 : vector<8x1xf32> to vector<8x8xf32>
    %37 = arith.mulf %32, %36 : vector<8x8xf32>
    %38 = vector.shape_cast %37 : vector<8x8xf32> to vector<8x8x1xf32>
    %39 = vector.broadcast %38 : vector<8x8x1xf32> to vector<8x8x128xf32>
    %40 = arith.mulf %39, %1 : vector<8x8x128xf32>
    %cst_19 = arith.constant dense<0.000000e+00> : vector<8x128xf32>
    %41 = vector.multi_reduction <add>, %40, %cst_19 [1] : vector<8x8x128xf32> to vector<8x128xf32>
    %c0_20 = arith.constant 0 : index
    %c0_21 = arith.constant 0 : index
    %42 = vector.load %arg8[%c0_20, %c0_21] : memref<8x128xf32, #tpu.memory_space<vmem>>, vector<8x128xf32>
    tpu.vector_store %arg8[%c0_20, %c0_21], %41 {strides = array<i32>} : memref<8x128xf32, #tpu.memory_space<vmem>>, vector<8x128xf32>,
    %c0_22 = arith.constant 0 : index
    %c0_23 = arith.constant 0 : index
    %43 = vector.load %arg9[%c0_22, %c0_23] : memref<8x8xf32, #tpu.memory_space<vmem>>, vector<8x8xf32>
    tpu.vector_store %arg9[%c0_22, %c0_23], %37 {strides = array<i32>} : memref<8x8xf32, #tpu.memory_space<vmem>>, vector<8x8xf32>,
    return
  }
  func.func @transform_0(%arg0: i32) -> (i32, i32) {
    %c0_i32 = arith.constant 0 : i32
    %c0_i32_0 = arith.constant 0 : i32
    return %arg0, %c0_i32 : i32, i32
  }
  func.func @transform_1(%arg0: i32) -> (i32, i32, i32) {
    %c0_i32 = arith.constant 0 : i32
    %c0_i32_0 = arith.constant 0 : i32
    %c0_i32_1 = arith.constant 0 : i32
    return %arg0, %c0_i32, %c0_i32_0 : i32, i32, i32
  }
  func.func @transform_2(%arg0: i32) -> (i32, i32) {
    %c0_i32 = arith.constant 0 : i32
    %c0_i32_0 = arith.constant 0 : i32
    %c0_i32_1 = arith.constant 0 : i32
    return %c0_i32, %c0_i32_0 : i32, i32
  }
  func.func @transform_3(%arg0: i32) -> (i32, i32) {
    %c0_i32 = arith.constant 0 : i32
    %c0_i32_0 = arith.constant 0 : i32
    %c0_i32_1 = arith.constant 0 : i32
    return %c0_i32, %c0_i32_0 : i32, i32
  }
  func.func @transform_4(%arg0: i32) -> (i32, i32) {
    %c0_i32 = arith.constant 0 : i32
    %c0_i32_0 = arith.constant 0 : i32
    %c0_i32_1 = arith.constant 0 : i32
    return %c0_i32, %c0_i32_0 : i32, i32
  }
  func.func @transform_5(%arg0: i32) -> (i32, i32) {
    %c0_i32 = arith.constant 0 : i32
    %c0_i32_0 = arith.constant 0 : i32
    %c0_i32_1 = arith.constant 0 : i32
    return %c0_i32, %c0_i32_0 : i32, i32
  }
  func.func @transform_6(%arg0: i32) -> (i32, i32) {
    %c0_i32 = arith.constant 0 : i32
    %c0_i32_0 = arith.constant 0 : i32
    %c0_i32_1 = arith.constant 0 : i32
    return %c0_i32, %c0_i32_0 : i32, i32
  }
  func.func @transform_7(%arg0: i32) -> (i32, i32) {
    %c0_i32 = arith.constant 0 : i32
    %c0_i32_0 = arith.constant 0 : i32
    return %arg0, %c0_i32 : i32, i32
  }
  func.func @transform_8(%arg0: i32) -> (i32, i32) {
    %c0_i32 = arith.constant 0 : i32
    %c0_i32_0 = arith.constant 0 : i32
    return %arg0, %c0_i32 : i32, i32
  }
}

module attributes {stable_mosaic.version = 11 : i64} {
  func.func @attention_kernel(%arg0: i32, %arg1: memref<8x128xf32, #tpu.memory_space<vmem>>, %arg2: memref<8x8x128xf32, #tpu.memory_space<vmem>>, %arg3: memref<128x128xf32, #tpu.memory_space<vmem>>, %arg4: memref<1x128xf32, #tpu.memory_space<vmem>>, %arg5: memref<128x128xf32, #tpu.memory_space<vmem>>, %arg6: memref<1x128xf32, #tpu.memory_space<vmem>>, %arg7: memref<1x128xf32, #tpu.memory_space<vmem>>, %arg8: memref<8x128xf32, #tpu.memory_space<vmem>>, %arg9: memref<8x8xf32, #tpu.memory_space<vmem>>) attributes {dimension_semantics = [#tpu.dimension_semantics<parallel>], iteration_bounds = array<i64: 1>, scalar_prefetch = 0 : i64, scratch_operands = 0 : i64, tpu.core_type = #tpu.core_type<tc>, window_params = [{transform_indices = @transform_0, window_bounds = array<i64: 8, 128>}, {transform_indices = @transform_1, window_bounds = array<i64: 8, 8, 128>}, {pipeline_mode = #tpu.pipeline_mode<synchronous>, transform_indices = @transform_2, window_bounds = array<i64: 128, 128>}, {pipeline_mode = #tpu.pipeline_mode<synchronous>, transform_indices = @transform_3, window_bounds = array<i64: 1, 128>}, {pipeline_mode = #tpu.pipeline_mode<synchronous>, transform_indices = @transform_4, window_bounds = array<i64: 128, 128>}, {pipeline_mode = #tpu.pipeline_mode<synchronous>, transform_indices = @transform_5, window_bounds = array<i64: 1, 128>}, {pipeline_mode = #tpu.pipeline_mode<synchronous>, transform_indices = @transform_6, window_bounds = array<i64: 1, 128>}, {transform_indices = @transform_7, window_bounds = array<i64: 8, 128>}, {transform_indices = @transform_8, window_bounds = array<i64: 8, 8>}]} {
    %c0 = arith.constant 0 : index
    %c0_0 = arith.constant 0 : index
    %0 = vector.load %arg1[%c0, %c0_0] : memref<8x128xf32, #tpu.memory_space<vmem>>, vector<8x128xf32>
    %c0_1 = arith.constant 0 : index
    %c0_2 = arith.constant 0 : index
    %c0_3 = arith.constant 0 : index
    %1 = vector.load %arg2[%c0_1, %c0_2, %c0_3] : memref<8x8x128xf32, #tpu.memory_space<vmem>>, vector<8x8x128xf32>
    %c0_4 = arith.constant 0 : index
    %c0_5 = arith.constant 0 : index
    %2 = vector.load %arg3[%c0_4, %c0_5] : memref<128x128xf32, #tpu.memory_space<vmem>>, vector<128x128xf32>
    %cst = arith.constant dense<0.000000e+00> : vector<8x128xf32>
    %3 = tpu.matmul %0, %2, %cst {dimension_numbers = #tpu.dot_dimension_numbers<[1], [0], [0], [1], [0, 0, 1, 1], [], []>} : vector<8x128xf32>, vector<128x128xf32>, vector<8x128xf32> -> vector<8x128xf32>
    %c0_6 = arith.constant 0 : index
    %c0_7 = arith.constant 0 : index
    %4 = vector.load %arg4[%c0_6, %c0_7] : memref<1x128xf32, #tpu.memory_space<vmem>>, vector<1x128xf32>
    %5 = vector.broadcast %4 : vector<1x128xf32> to vector<8x128xf32>
    %6 = arith.addf %3, %5 : vector<8x128xf32>
    %7 = vector.shape_cast %1 : vector<8x8x128xf32> to vector<64x128xf32>
    %c0_8 = arith.constant 0 : index
    %c0_9 = arith.constant 0 : index
    %8 = vector.load %arg5[%c0_8, %c0_9] : memref<128x128xf32, #tpu.memory_space<vmem>>, vector<128x128xf32>
    %cst_10 = arith.constant dense<0.000000e+00> : vector<64x128xf32>
    %9 = tpu.matmul %7, %8, %cst_10 {dimension_numbers = #tpu.dot_dimension_numbers<[1], [0], [0], [1], [0, 0, 1, 1], [], []>} : vector<64x128xf32>, vector<128x128xf32>, vector<64x128xf32> -> vector<64x128xf32>
    %c0_11 = arith.constant 0 : index
    %c0_12 = arith.constant 0 : index
    %10 = vector.load %arg6[%c0_11, %c0_12] : memref<1x128xf32, #tpu.memory_space<vmem>>, vector<1x128xf32>
    %11 = vector.broadcast %10 : vector<1x128xf32> to vector<64x128xf32>
    %12 = arith.addf %9, %11 : vector<64x128xf32>
    %13 = vector.shape_cast %12 : vector<64x128xf32> to vector<8x8x128xf32>
    %14 = vector.shape_cast %6 : vector<8x128xf32> to vector<8x1x128xf32>
    %15 = vector.broadcast %14 : vector<8x1x128xf32> to vector<8x8x128xf32>
    %16 = arith.addf %15, %13 : vector<8x8x128xf32>
    %17 = math.tanh %16 : vector<8x8x128xf32>
    %c0_13 = arith.constant 0 : index
    %c0_14 = arith.constant 0 : index
    %18 = vector.load %arg7[%c0_13, %c0_14] : memref<1x128xf32, #tpu.memory_space<vmem>>, vector<1x128xf32>
    %19 = vector.shape_cast %18 : vector<1x128xf32> to vector<1x1x128xf32>
    %20 = vector.broadcast %19 : vector<1x1x128xf32> to vector<8x8x128xf32>
    %21 = arith.mulf %17, %20 : vector<8x8x128xf32>
    %cst_15 = arith.constant dense<0.000000e+00> : vector<8x8xf32>
    %22 = vector.multi_reduction <add>, %21, %cst_15 [2] : vector<8x8x128xf32> to vector<8x8xf32>
    %23 = tpu.iota {dimensions = array<i32: 1>} : vector<8x8xi32>
    %c8_i32 = arith.constant 8 : i32
    %24 = vector.broadcast %c8_i32 : i32 to vector<8x8xi32>
    %25 = arith.cmpi slt, %23, %24 : vector<8x8xi32>
    %cst_16 = arith.constant -1.000000e+30 : f32
    %26 = vector.broadcast %cst_16 : f32 to vector<8x8xf32>
    %27 = arith.select %25, %22, %26 : vector<8x8xi1>, vector<8x8xf32>
    %cst_17 = arith.constant dense<0xFF800000> : vector<8xf32>
    %28 = vector.multi_reduction <maximumf>, %27, %cst_17 [1] : vector<8x8xf32> to vector<8xf32>
    %29 = vector.shape_cast %28 : vector<8xf32> to vector<8x1xf32>
    %30 = vector.broadcast %29 : vector<8x1xf32> to vector<8x8xf32>
    %31 = arith.subf %27, %30 : vector<8x8xf32>
    %32 = math.exp %31 : vector<8x8xf32>
    %cst_18 = arith.constant dense<0.000000e+00> : vector<8xf32>
    %33 = vector.multi_reduction <add>, %32, %cst_18 [1] : vector<8x8xf32> to vector<8xf32>
    %34 = vector.shape_cast %33 : vector<8xf32> to vector<8x1xf32>
    %35 = tpu.reciprocal %34 {approx = true} : vector<8x1xf32> -> vector<8x1xf32>
    %36 = vector.broadcast %35 : vector<8x1xf32> to vector<8x8xf32>
    %37 = arith.mulf %32, %36 : vector<8x8xf32>
    %38 = vector.shape_cast %37 : vector<8x8xf32> to vector<8x8x1xf32>
    %39 = vector.broadcast %38 : vector<8x8x1xf32> to vector<8x8x128xf32>
    %40 = arith.mulf %39, %1 : vector<8x8x128xf32>
    %cst_19 = arith.constant dense<0.000000e+00> : vector<8x128xf32>
    %41 = vector.multi_reduction <add>, %40, %cst_19 [1] : vector<8x8x128xf32> to vector<8x128xf32>
    %c0_20 = arith.constant 0 : index
    %c0_21 = arith.constant 0 : index
    %42 = vector.load %arg8[%c0_20, %c0_21] : memref<8x128xf32, #tpu.memory_space<vmem>>, vector<8x128xf32>
    tpu.vector_store %arg8[%c0_20, %c0_21], %41 {strides = array<i32>} : memref<8x128xf32, #tpu.memory_space<vmem>>, vector<8x128xf32>,
    %c0_22 = arith.constant 0 : index
    %c0_23 = arith.constant 0 : index
    %43 = vector.load %arg9[%c0_22, %c0_23] : memref<8x8xf32, #tpu.memory_space<vmem>>, vector<8x8xf32>
    tpu.vector_store %arg9[%c0_22, %c0_23], %37 {strides = array<i32>} : memref<8x8xf32, #tpu.memory_space<vmem>>, vector<8x8xf32>,
    return
  }
  func.func @transform_0(%arg0: i32) -> (i32, i32) {
    %c0_i32 = arith.constant 0 : i32
    %c0_i32_0 = arith.constant 0 : i32
    return %arg0, %c0_i32 : i32, i32
  }
  func.func @transform_1(%arg0: i32) -> (i32, i32, i32) {
    %c0_i32 = arith.constant 0 : i32
    %c0_i32_0 = arith.constant 0 : i32
    %c0_i32_1 = arith.constant 0 : i32
    return %arg0, %c0_i32, %c0_i32_0 : i32, i32, i32
  }
  func.func @transform_2(%arg0: i32) -> (i32, i32) {
    %c0_i32 = arith.constant 0 : i32
    %c0_i32_0 = arith.constant 0 : i32
    %c0_i32_1 = arith.constant 0 : i32
    return %c0_i32, %c0_i32_0 : i32, i32
  }
  func.func @transform_3(%arg0: i32) -> (i32, i32) {
    %c0_i32 = arith.constant 0 : i32
    %c0_i32_0 = arith.constant 0 : i32
    %c0_i32_1 = arith.constant 0 : i32
    return %c0_i32, %c0_i32_0 : i32, i32
  }
  func.func @transform_4(%arg0: i32) -> (i32, i32) {
    %c0_i32 = arith.constant 0 : i32
    %c0_i32_0 = arith.constant 0 : i32
    %c0_i32_1 = arith.constant 0 : i32
    return %c0_i32, %c0_i32_0 : i32, i32
  }
  func.func @transform_5(%arg0: i32) -> (i32, i32) {
    %c0_i32 = arith.constant 0 : i32
    %c0_i32_0 = arith.constant 0 : i32
    %c0_i32_1 = arith.constant 0 : i32
    return %c0_i32, %c0_i32_0 : i32, i32
  }
  func.func @transform_6(%arg0: i32) -> (i32, i32) {
    %c0_i32 = arith.constant 0 : i32
    %c0_i32_0 = arith.constant 0 : i32
    %c0_i32_1 = arith.constant 0 : i32
    return %c0_i32, %c0_i32_0 : i32, i32
  }
  func.func @transform_7(%arg0: i32) -> (i32, i32) {
    %c0_i32 = arith.constant 0 : i32
    %c0_i32_0 = arith.constant 0 : i32
    return %arg0, %c0_i32 : i32, i32
  }
  func.func @transform_8(%arg0: i32) -> (i32, i32) {
    %c0_i32 = arith.constant 0 : i32
    %c0_i32_0 = arith.constant 0 : i32
    return %arg0, %c0_i32 : i32, i32
  }
}

</mosaic_0001>

<llo_original>
// kernel: tpu_custom_call.1
$region0: #{tpu_custom_call.1}
  #allocation0 [shape = 'u32[]', space=smem, size = 0x4, offset = 0x4, fixed_abs, tag = 'smem constant byte address 0x4 - core index']
  #allocation1 [shape = 'u32[144,128]{1,0:T(1,128)}', space=vmem, size = 0x12000, scoped, tag = 'internal scratch']
  %s0 = inlined_call_operand.hbm [shape: f32[8,128], index: 0, kind: input, shape index: {}]
  %s1 = inlined_call_operand.hbm [shape: f32[8,8,128], index: 1, kind: input, shape index: {}]
  %s2 = inlined_call_operand.hbm [shape: f32[128,128], index: 2, kind: input, shape index: {}]
  %s3 = inlined_call_operand.vmem [shape: f32[1,128], index: 3, kind: input, shape index: {}]
  %s4 = inlined_call_operand.hbm [shape: f32[128,128], index: 4, kind: input, shape index: {}]
  %s5 = inlined_call_operand.vmem [shape: f32[1,128], index: 5, kind: input, shape index: {}]
  %s6 = inlined_call_operand.vmem [shape: f32[1,128], index: 6, kind: input, shape index: {}]
  %s7 = inlined_call_operand.hbm [shape: f32[8,128], index: 7, kind: output, shape index: {0}]
  %s8 = inlined_call_operand.hbm [shape: f32[8,8], index: 8, kind: output, shape index: {1}]
  %9 = xla_tuple %s7, %s8
  %s10 = sld [smem:[#allocation0]]
  $region62: #{tpu_custom_call.1} parent=0
    _
  %s12 = ssub.s32 1, %s10
  %s13 = scalar_select 0, %s12, %s10
  $region1: #{tpu_custom_call.1} parent=0
    #allocation2 [shape = 'u8[4096]{0}', space=vmem, size = 0x1000, scoped, tag = 'input window, operand 0, single buffered']
    #allocation3 [shape = 's32[1]{0}', space=sflag, size = 0x4, scoped, tag = 'scoped memory for tpu_custom_call.1']
    #allocation4 [shape = 's32[1]{0}', space=sflag, size = 0x4, scoped, tag = 'scoped memory for tpu_custom_call.1']
    #allocation5 [shape = 'u8[32768]{0}', space=vmem, size = 0x8000, scoped, tag = 'input window, operand 1, single buffered']
    #allocation6 [shape = 's32[1]{0}', space=sflag, size = 0x4, scoped, tag = 'scoped memory for tpu_custom_call.1']
    #allocation7 [shape = 'u8[65536]{0}', space=vmem, size = 0x10000, scoped, tag = 'input window, operand 2, single buffered']
    #allocation8 [shape = 'u8[65536]{0}', space=vmem, size = 0x10000, scoped, tag = 'input window, operand 4, single buffered']
    #allocation9 [shape = 's32[1]{0}', space=sflag, size = 0x4, scoped, tag = 'scoped memory for tpu_custom_call.1']
    #allocation10 [shape = 'u8[4096]{0}', space=vmem, size = 0x1000, scoped, tag = 'output window, operand 0, single buffered']
    #allocation11 [shape = 'u8[4096]{0}', space=vmem, size = 0x1000, scoped, tag = 'output window, operand 1, single buffered']
    #allocation12 [shape = 's32[1]{0}', space=sflag, size = 0x4, scoped, tag = 'scoped memory for tpu_custom_call.1']
    %14 = vsyncpa [#allocation3], 0
    %15 = vsyncpa [#allocation6], 0
    %16 = vsyncpa [#allocation9], 0
    %17 = vsyncpa [#allocation4], 0
    %18 = vsyncpa [#allocation12], 0
    // Predicated region
    $region2: #{tpu_custom_call.1} parent=1 // pred_check
      _
    $region3: #{tpu_custom_call.1} parent=1 // pred_check_branch
      %20 = sbr.rel (0) target = $region5
    $region4: #{tpu_custom_call.1} parent=1 // pred_region
      %s22 = ssub.s32 128, 128
      %23 = vsyncadd [#allocation3], %s22
      %s25 = sshll.u32 [#allocation2], 4
      %s26 = int_to_ptr.vmem [resolvable:$true] %s25
      %28 = dma.hbm_to_vmem [thread:$0]  %s0, 128, %s26, [#allocation3]
    $region5: #{tpu_custom_call.1} parent=1 // pred_fallthru
      _
    // Predicated region
    $region6: #{tpu_custom_call.1} parent=1 // pred_check
      _
    $region7: #{tpu_custom_call.1} parent=1 // pred_check_branch
      %30 = sbr.rel (0) target = $region9
    $region8: #{tpu_custom_call.1} parent=1 // pred_region
      %s32 = ssub.s32 1024, 1024
      %33 = vsyncadd [#allocation6], %s32
      %s34 = sshll.u32 [#allocation5], 4
      %s35 = int_to_ptr.vmem [resolvable:$true] %s34
      %40 = dma.hbm_to_vmem [thread:$0]  %s1, 1024, %s35, [#allocation6], 128, 128, 8
    $region9: #{tpu_custom_call.1} parent=1 // pred_fallthru
      _
    // Predicated region
    $region10: #{tpu_custom_call.1} parent=1 // pred_check
      _
    $region11: #{tpu_custom_call.1} parent=1 // pred_check_branch
      %42 = sbr.rel (0) target = $region13
    $region12: #{tpu_custom_call.1} parent=1 // pred_region
      %s44 = ssub.s32 2048, 2048
      %45 = vsyncadd [#allocation6], %s44
      %s46 = sshll.u32 [#allocation7], 4
      %s47 = int_to_ptr.vmem [resolvable:$true] %s46
      %52 = dma.hbm_to_vmem [thread:$0]  %s2, 2048, %s47, [#allocation6], 128, 128, 8
    $region13: #{tpu_custom_call.1} parent=1 // pred_fallthru
      _
    // Predicated region
    $region14: #{tpu_custom_call.1} parent=1 // pred_check
      _
    $region15: #{tpu_custom_call.1} parent=1 // pred_check_branch
      %54 = sbr.rel (0) target = $region17
    $region16: #{tpu_custom_call.1} parent=1 // pred_region
      _
    $region17: #{tpu_custom_call.1} parent=1 // pred_fallthru
      _
    // Predicated region
    $region18: #{tpu_custom_call.1} parent=1 // pred_check
      _
    $region19: #{tpu_custom_call.1} parent=1 // pred_check_branch
      %56 = sbr.rel (0) target = $region21
    $region20: #{tpu_custom_call.1} parent=1 // pred_region
      %s58 = ssub.s32 2048, 2048
      %59 = vsyncadd [#allocation9], %s58
      %s60 = sshll.u32 [#allocation8], 4
      %s61 = int_to_ptr.vmem [resolvable:$true] %s60
      %66 = dma.hbm_to_vmem [thread:$0]  %s4, 2048, %s61, [#allocation9], 128, 128, 8
    $region21: #{tpu_custom_call.1} parent=1 // pred_fallthru
      _
    // Predicated region
    $region22: #{tpu_custom_call.1} parent=1 // pred_check
      _
    $region23: #{tpu_custom_call.1} parent=1 // pred_check_branch
      %68 = sbr.rel (0) target = $region25
    $region24: #{tpu_custom_call.1} parent=1 // pred_region
      _
    $region25: #{tpu_custom_call.1} parent=1 // pred_fallthru
      _
    // Predicated region
    $region26: #{tpu_custom_call.1} parent=1 // pred_check
      _
    $region27: #{tpu_custom_call.1} parent=1 // pred_check_branch
      %70 = sbr.rel (0) target = $region29
    $region28: #{tpu_custom_call.1} parent=1 // pred_region
      _
    $region29: #{tpu_custom_call.1} parent=1 // pred_fallthru
      _
    // Predicated region
    $region30: #{tpu_custom_call.1} parent=1 // pred_check
      _
    $region31: #{tpu_custom_call.1} parent=1 // pred_check_branch
      %72 = sbr.rel (0) target = $region33
    $region32: #{tpu_custom_call.1} parent=1 // pred_region
      %73 = dma.done [#allocation3], 128
    $region33: #{tpu_custom_call.1} parent=1 // pred_fallthru
      _
    // Predicated region
    $region34: #{tpu_custom_call.1} parent=1 // pred_check
      _
    $region35: #{tpu_custom_call.1} parent=1 // pred_check_branch
      %75 = sbr.rel (0) target = $region37
    $region36: #{tpu_custom_call.1} parent=1 // pred_region
      %76 = dma.done [#allocation6], 1024
    $region37: #{tpu_custom_call.1} parent=1 // pred_fallthru
      _
    // Predicated region
    $region38: #{tpu_custom_call.1} parent=1 // pred_check
      _
    $region39: #{tpu_custom_call.1} parent=1 // pred_check_branch
      %78 = sbr.rel (0) target = $region41
    $region40: #{tpu_custom_call.1} parent=1 // pred_region
      %79 = dma.done [#allocation6], 2048
    $region41: #{tpu_custom_call.1} parent=1 // pred_fallthru
      _
    // Predicated region
    $region42: #{tpu_custom_call.1} parent=1 // pred_check
      _
    $region43: #{tpu_custom_call.1} parent=1 // pred_check_branch
      %81 = sbr.rel (0) target = $region45
    $region44: #{tpu_custom_call.1} parent=1 // pred_region
      %82 = dma.done [#allocation9], 2048
    $region45: #{tpu_custom_call.1} parent=1 // pred_fallthru
      _
    %v83 = vld [vmem:[#allocation2] sm:$0xff]
    %v84 = vld [vmem:[#allocation5] sm:$0xff]
    %v85 = vld [vmem:[#allocation5 + $0x8] sm:$0xff]
    %v86 = vld [vmem:[#allocation5 + $0x10] sm:$0xff]
    %v87 = vld [vmem:[#allocation5 + $0x18] sm:$0xff]
    %v88 = vld [vmem:[#allocation5 + $0x20] sm:$0xff]
    %v89 = vld [vmem:[#allocation5 + $0x28] sm:$0xff]
    %v90 = vld [vmem:[#allocation5 + $0x30] sm:$0xff]
    %v91 = vld [vmem:[#allocation5 + $0x38] sm:$0xff]
    %v92 = vld [vmem:[#allocation7] sm:$0xff]
    %v93 = vld [vmem:[#allocation7 + $0x8] sm:$0xff]
    %v94 = vld [vmem:[#allocation7 + $0x10] sm:$0xff]
    %v95 = vld [vmem:[#allocation7 + $0x18] sm:$0xff]
    %v96 = vld [vmem:[#allocation7 + $0x20] sm:$0xff]
    %v97 = vld [vmem:[#allocation7 + $0x28] sm:$0xff]
    %v98 = vld [vmem:[#allocation7 + $0x30] sm:$0xff]
    %v99 = vld [vmem:[#allocation7 + $0x38] sm:$0xff]
    %v100 = vld [vmem:[#allocation7 + $0x40] sm:$0xff]
    %v101 = vld [vmem:[#allocation7 + $0x48] sm:$0xff]
    %v102 = vld [vmem:[#allocation7 + $0x50] sm:$0xff]
    %v103 = vld [vmem:[#allocation7 + $0x58] sm:$0xff]
    %v104 = vld [vmem:[#allocation7 + $0x60] sm:$0xff]
    %v105 = vld [vmem:[#allocation7 + $0x68] sm:$0xff]
    %v106 = vld [vmem:[#allocation7 + $0x70] sm:$0xff]
    %v107 = vld [vmem:[#allocation7 + $0x78] sm:$0xff]
    %v108 = vld [vmem:[%s3] sm:$0x1]
    %v110 = vlaneseq
    %v111 = vshrl.u32 %v110, 7
    %v112 = vsub.s32 0, %v111
    %v113 = vrot.slane %v108, %v112
    %115 = vmatprep.subr.mxu0 0.0
    %116 = vmatpush1.msra.mxu0 %v107
    %117 = vmatprep.subr.mxu0 0.0
    %118 = vmatpush1.msra.mxu0 %v106
    %119 = vmatprep.subr.mxu0 0.0
    %120 = vmatpush1.msra.mxu0 %v105
    %121 = vmatprep.subr.mxu0 0.0
    %122 = vmatpush1.msra.mxu0 %v104
    %123 = vmatprep.subr.mxu0 0.0
    %124 = vmatpush1.msra.mxu0 %v103
    %125 = vmatprep.subr.mxu0 0.0
    %126 = vmatpush1.msra.mxu0 %v102
    %127 = vmatprep.subr.mxu0 0.0
    %128 = vmatpush1.msra.mxu0 %v101
    %129 = vmatprep.subr.mxu0 0.0
    %130 = vmatpush1.msra.mxu0 %v100
    %131 = vmatprep.subr.mxu0 0.0
    %132 = vmatpush1.msra.mxu0 %v99
    %133 = vmatprep.subr.mxu0 0.0
    %134 = vmatpush1.msra.mxu0 %v98
    %135 = vmatprep.subr.mxu0 0.0
    %136 = vmatpush1.msra.mxu0 %v97
    %137 = vmatprep.subr.mxu0 0.0
    %138 = vmatpush1.msra.mxu0 %v96
    %139 = vmatprep.subr.mxu0 0.0
    %140 = vmatpush1.msra.mxu0 %v95
    %141 = vmatprep.subr.mxu0 0.0
    %142 = vmatpush1.msra.mxu0 %v94
    %143 = vmatprep.subr.mxu0 0.0
    %144 = vmatpush1.msra.mxu0 %v93
    %145 = vmatprep.subr.mxu0 0.0
    %146 = vmatpush1.msra.mxu0 %v92
    %147 = vmatprep.subr.mxu0 0.0
    %148 = vmatpush2.msra.mxu0 0.0
    %149 = vmatprep.subr.mxu0 0.0
    %150 = vmatpush2.msra.mxu0 0.0
    %151 = vmatprep.subr.mxu0 0.0
    %152 = vmatpush2.msra.mxu0 0.0
    %153 = vmatprep.subr.mxu0 0.0
    %154 = vmatpush2.msra.mxu0 0.0
    %155 = vmatprep.subr.mxu0 0.0
    %156 = vmatpush2.msra.mxu0 0.0
    %157 = vmatprep.subr.mxu0 0.0
    %158 = vmatpush2.msra.mxu0 0.0
    %159 = vmatprep.subr.mxu0 0.0
    %160 = vmatpush2.msra.mxu0 0.0
    %161 = vmatprep.subr.mxu0 0.0
    %162 = vmatpush2.msra.mxu0 0.0
    %163 = vmatprep.subr.mxu0 0.0
    %164 = vmatpush2.msra.mxu0 0.0
    %165 = vmatprep.subr.mxu0 0.0
    %166 = vmatpush2.msra.mxu0 0.0
    %167 = vmatprep.subr.mxu0 0.0
    %168 = vmatpush2.msra.mxu0 0.0
    %169 = vmatprep.subr.mxu0 0.0
    %170 = vmatpush2.msra.mxu0 0.0
    %171 = vmatprep.subr.mxu0 0.0
    %172 = vmatpush2.msra.mxu0 0.0
    %173 = vmatprep.subr.mxu0 0.0
    %174 = vmatpush2.msra.mxu0 0.0
    %175 = vmatprep.subr.mxu0 0.0
    %176 = vmatpush2.msra.mxu0 0.0
    %177 = vmatprep.subr.mxu0 0.0
    %178 = vmatpush2.msra.mxu0 0.0
    %179 = vmatprep.mubr.f32.mxu0 0.0
    %180 = vmatmul.mubr.f32.gmra.mxu0 %v83
    %v181 = vpop.f32.mrf.mxu0
    %v182 = vadd.f32 %v113, %v181
    %v183 = vpop.f32.mrf.mxu0
    %184 = vdwg.mxu0
    %v185 = vld [vmem:[#allocation8] sm:$0xff]
    %v186 = vld [vmem:[#allocation8 + $0x8] sm:$0xff]
    %v187 = vld [vmem:[#allocation8 + $0x10] sm:$0xff]
    %v188 = vld [vmem:[#allocation8 + $0x18] sm:$0xff]
    %v189 = vld [vmem:[#allocation8 + $0x20] sm:$0xff]
    %v190 = vld [vmem:[#allocation8 + $0x28] sm:$0xff]
    %v191 = vld [vmem:[#allocation8 + $0x30] sm:$0xff]
    %v192 = vld [vmem:[#allocation8 + $0x38] sm:$0xff]
    %v193 = vld [vmem:[#allocation8 + $0x40] sm:$0xff]
    %v194 = vld [vmem:[#allocation8 + $0x48] sm:$0xff]
    %v195 = vld [vmem:[#allocation8 + $0x50] sm:$0xff]
    %v196 = vld [vmem:[#allocation8 + $0x58] sm:$0xff]
    %v197 = vld [vmem:[#allocation8 + $0x60] sm:$0xff]
    %v198 = vld [vmem:[#allocation8 + $0x68] sm:$0xff]
    %v199 = vld [vmem:[#allocation8 + $0x70] sm:$0xff]
    %v200 = vld [vmem:[#allocation8 + $0x78] sm:$0xff]
    %v201 = vld [vmem:[%s5] sm:$0x1]
    %v203 = vlaneseq
    %v204 = vshrl.u32 %v203, 7
    %v205 = vsub.s32 0, %v204
    %v206 = vrot.slane %v201, %v205
    %208 = vmatprep.subr.mxu0 0.0
    %209 = vmatpush1.msra.mxu0 %v200
    %210 = vmatprep.subr.mxu0 0.0
    %211 = vmatpush1.msra.mxu0 %v199
    %212 = vmatprep.subr.mxu0 0.0
    %213 = vmatpush1.msra.mxu0 %v198
    %214 = vmatprep.subr.mxu0 0.0
    %215 = vmatpush1.msra.mxu0 %v197
    %216 = vmatprep.subr.mxu0 0.0
    %217 = vmatpush1.msra.mxu0 %v196
    %218 = vmatprep.subr.mxu0 0.0
    %219 = vmatpush1.msra.mxu0 %v195
    %220 = vmatprep.subr.mxu0 0.0
    %221 = vmatpush1.msra.mxu0 %v194
    %222 = vmatprep.subr.mxu0 0.0
    %223 = vmatpush1.msra.mxu0 %v193
    %224 = vmatprep.subr.mxu0 0.0
    %225 = vmatpush1.msra.mxu0 %v192
    %226 = vmatprep.subr.mxu0 0.0
    %227 = vmatpush1.msra.mxu0 %v191
    %228 = vmatprep.subr.mxu0 0.0
    %229 = vmatpush1.msra.mxu0 %v190
    %230 = vmatprep.subr.mxu0 0.0
    %231 = vmatpush1.msra.mxu0 %v189
    %232 = vmatprep.subr.mxu0 0.0
    %233 = vmatpush1.msra.mxu0 %v188
    %234 = vmatprep.subr.mxu0 0.0
    %235 = vmatpush1.msra.mxu0 %v187
    %236 = vmatprep.subr.mxu0 0.0
    %237 = vmatpush1.msra.mxu0 %v186
    %238 = vmatprep.subr.mxu0 0.0
    %239 = vmatpush1.msra.mxu0 %v185
    %240 = vmatprep.subr.mxu0 0.0
    %241 = vmatpush2.msra.mxu0 0.0
    %242 = vmatprep.subr.mxu0 0.0
    %243 = vmatpush2.msra.mxu0 0.0
    %244 = vmatprep.subr.mxu0 0.0
    %245 = vmatpush2.msra.mxu0 0.0
    %246 = vmatprep.subr.mxu0 0.0
    %247 = vmatpush2.msra.mxu0 0.0
    %248 = vmatprep.subr.mxu0 0.0
    %249 = vmatpush2.msra.mxu0 0.0
    %250 = vmatprep.subr.mxu0 0.0
    %251 = vmatpush2.msra.mxu0 0.0
    %252 = vmatprep.subr.mxu0 0.0
    %253 = vmatpush2.msra.mxu0 0.0
    %254 = vmatprep.subr.mxu0 0.0
    %255 = vmatpush2.msra.mxu0 0.0
    %256 = vmatprep.subr.mxu0 0.0
    %257 = vmatpush2.msra.mxu0 0.0
    %258 = vmatprep.subr.mxu0 0.0
    %259 = vmatpush2.msra.mxu0 0.0
    %260 = vmatprep.subr.mxu0 0.0
    %261 = vmatpush2.msra.mxu0 0.0
    %262 = vmatprep.subr.mxu0 0.0
    %263 = vmatpush2.msra.mxu0 0.0
    %264 = vmatprep.subr.mxu0 0.0
    %265 = vmatpush2.msra.mxu0 0.0
    %266 = vmatprep.subr.mxu0 0.0
    %267 = vmatpush2.msra.mxu0 0.0
    %268 = vmatprep.subr.mxu0 0.0
    %269 = vmatpush2.msra.mxu0 0.0
    %270 = vmatprep.subr.mxu0 0.0
    %271 = vmatpush2.msra.mxu0 0.0
    %272 = vmatprep.mubr.f32.mxu0 0.0
    %273 = vmatmul.mubr.f32.gmra.mxu0 %v84
    %v274 = vpop.f32.mrf.mxu0
    %v275 = vadd.f32 %v206, %v274
    %v276 = vpop.f32.mrf.mxu0
    %277 = vmatprep.mubr.f32.mxu0 0.0
    %278 = vmatmul.mubr.f32.gmra.mxu0 %v85
    %v279 = vpop.f32.mrf.mxu0
    %v280 = vadd.f32 %v206, %v279
    %v281 = vpop.f32.mrf.mxu0
    %282 = vmatprep.mubr.f32.mxu0 0.0
    %283 = vmatmul.mubr.f32.gmra.mxu0 %v86
    %v284 = vpop.f32.mrf.mxu0
    %v285 = vadd.f32 %v206, %v284
    %v286 = vpop.f32.mrf.mxu0
    %287 = vmatprep.mubr.f32.mxu0 0.0
    %288 = vmatmul.mubr.f32.gmra.mxu0 %v87
    %v289 = vpop.f32.mrf.mxu0
    %v290 = vadd.f32 %v206, %v289
    %v291 = vpop.f32.mrf.mxu0
    %292 = vmatprep.mubr.f32.mxu0 0.0
    %293 = vmatmul.mubr.f32.gmra.mxu0 %v88
    %v294 = vpop.f32.mrf.mxu0
    %v295 = vadd.f32 %v206, %v294
    %v296 = vpop.f32.mrf.mxu0
    %297 = vmatprep.mubr.f32.mxu0 0.0
    %298 = vmatmul.mubr.f32.gmra.mxu0 %v89
    %v299 = vpop.f32.mrf.mxu0
    %v300 = vadd.f32 %v206, %v299
    %v301 = vpop.f32.mrf.mxu0
    %302 = vmatprep.mubr.f32.mxu0 0.0
    %303 = vmatmul.mubr.f32.gmra.mxu0 %v90
    %v304 = vpop.f32.mrf.mxu0
    %v305 = vadd.f32 %v206, %v304
    %v306 = vpop.f32.mrf.mxu0
    %307 = vmatprep.mubr.f32.mxu0 0.0
    %308 = vmatmul.mubr.f32.gmra.mxu0 %v91
    %v309 = vpop.f32.mrf.mxu0
    %v310 = vadd.f32 %v206, %v309
    %v311 = vpop.f32.mrf.mxu0
    %312 = vdwg.mxu0
    %v314 = vcombine.high %v182, %v182
    %v316 = vunpack.c.l.s4 1966171168
    %v317 = vunpack.c.0.s8 %v316
    %v318 = vlaneseq
    %v319 = vshrl.u32 %v318, 7
    %v320 = vsub.s32 %v317, %v319
    %v321 = vrot.slane %v182, %v320
    %v323 = vunpack.c.l.s4 1966171168
    %v324 = vunpack.c.0.s8 %v323
    %v325 = vlaneseq
    %v326 = vshrl.u32 %v325, 7
    %v327 = vsub.s32 %v324, %v326
    %v328 = vrot.slane %v314, %v327
    %v329 = vcombine.high %v321, %v321
    %v330 = vcombine.high %v328, %v328
    %v332 = vunpack.c.l.s4 1966171168
    %v333 = vunpack.c.0.s8 %v332
    %v334 = vlaneseq
    %v335 = vshrl.u32 %v334, 7
    %v336 = vsub.s32 %v333, %v335
    %v337 = vrot.slane %v321, %v336
    %v339 = vunpack.c.l.s4 1966171168
    %v340 = vunpack.c.0.s8 %v339
    %v341 = vlaneseq
    %v342 = vshrl.u32 %v341, 7
    %v343 = vsub.s32 %v340, %v342
    %v344 = vrot.slane %v328, %v343
    %v346 = vunpack.c.l.s4 1966171168
    %v347 = vunpack.c.0.s8 %v346
    %v348 = vlaneseq
    %v349 = vshrl.u32 %v348, 7
    %v350 = vsub.s32 %v347, %v349
    %v351 = vrot.slane %v329, %v350
    %v353 = vunpack.c.l.s4 1966171168
    %v354 = vunpack.c.0.s8 %v353
    %v355 = vlaneseq
    %v356 = vshrl.u32 %v355, 7
    %v357 = vsub.s32 %v354, %v356
    %v358 = vrot.slane %v330, %v357
    %v359 = vcombine.high %v337, %v337
    %v360 = vcombine.high %v344, %v344
    %v361 = vcombine.high %v351, %v351
    %v362 = vcombine.high %v358, %v358
    %v363 = vlaneseq
    %v364 = vshrl.u32 %v363, 7
    %v365 = vsub.s32 0, %v364
    %v366 = vrot.slane %v337, %v365
    %v367 = vlaneseq
    %v368 = vshrl.u32 %v367, 7
    %v369 = vsub.s32 0, %v368
    %v370 = vrot.slane %v351, %v369
    %v371 = vlaneseq
    %v372 = vshrl.u32 %v371, 7
    %v373 = vsub.s32 0, %v372
    %v374 = vrot.slane %v359, %v373
    %v375 = vlaneseq
    %v376 = vshrl.u32 %v375, 7
    %v377 = vsub.s32 0, %v376
    %v378 = vrot.slane %v361, %v377
    %v379 = vlaneseq
    %v380 = vshrl.u32 %v379, 7
    %v381 = vsub.s32 0, %v380
    %v382 = vrot.slane %v344, %v381
    %v383 = vlaneseq
    %v384 = vshrl.u32 %v383, 7
    %v385 = vsub.s32 0, %v384
    %v386 = vrot.slane %v358, %v385
    %v387 = vlaneseq
    %v388 = vshrl.u32 %v387, 7
    %v389 = vsub.s32 0, %v388
    %v390 = vrot.slane %v360, %v389
    %v391 = vlaneseq
    %v392 = vshrl.u32 %v391, 7
    %v393 = vsub.s32 0, %v392
    %v394 = vrot.slane %v362, %v393
    %v403 = vadd.f32 %v366, %v275
    %v404 = vadd.f32 %v370, %v280
    %v405 = vadd.f32 %v374, %v285
    %v406 = vadd.f32 %v378, %v290
    %v407 = vadd.f32 %v382, %v295
    %v408 = vadd.f32 %v386, %v300
    %v409 = vadd.f32 %v390, %v305
    %v410 = vadd.f32 %v394, %v310
    %v411 = vtanh.pop %v403
    %v412 = vtanh.pop %v404
    %v413 = vtanh.pop %v405
    %v414 = vtanh.pop %v406
    %v415 = vtanh.pop %v407
    %v416 = vtanh.pop %v408
    %v417 = vtanh.pop %v409
    %v418 = vtanh.pop %v410
    %v419 = vld [vmem:[%s6] sm:$0x1]
    %v421 = vlaneseq
    %v422 = vshrl.u32 %v421, 7
    %v423 = vsub.s32 0, %v422
    %v424 = vrot.slane %v419, %v423
    %v426 = vmul.f32 %v411, %v424
    %v427 = vmul.f32 %v412, %v424
    %v428 = vmul.f32 %v413, %v424
    %v429 = vmul.f32 %v414, %v424
    %v430 = vmul.f32 %v415, %v424
    %v431 = vmul.f32 %v416, %v424
    %v432 = vmul.f32 %v417, %v424
    %v433 = vmul.f32 %v418, %v424
    %434 = vadd.xlane.f32.xlu0 %v426
    %v435 = vpop.xlane.xlu0 %434
    %436 = vadd.xlane.f32.xlu0 %v427
    %v437 = vpop.xlane.xlu0 %436
    %438 = vadd.xlane.f32.xlu0 %v428
    %v439 = vpop.xlane.xlu0 %438
    %440 = vadd.xlane.f32.xlu0 %v429
    %v441 = vpop.xlane.xlu0 %440
    %442 = vadd.xlane.f32.xlu0 %v430
    %v443 = vpop.xlane.xlu0 %442
    %444 = vadd.xlane.f32.xlu0 %v431
    %v445 = vpop.xlane.xlu0 %444
    %446 = vadd.xlane.f32.xlu0 %v432
    %v447 = vpop.xlane.xlu0 %446
    %448 = vadd.xlane.f32.xlu0 %v433
    %v449 = vpop.xlane.xlu0 %448
    %v450 = vlaneseq
    %v451 = vand.u32 %v450, 127
    %vm452 = vcmp.lt.s32.totalorder %v451, 8
    %v461 = vlaneseq
    %v462 = vshrl.u32 %v461, 7
    %v463 = vsub.s32 %v451, %v462
    %v464 = vrot.slane %v435, %v463
    %v465 = vlaneseq
    %v466 = vshrl.u32 %v465, 7
    %v467 = vsub.s32 %v451, %v466
    %v468 = vrot.slane %v437, %v467
    %v469 = vlaneseq
    %v470 = vshrl.u32 %v469, 7
    %v471 = vsub.s32 %v451, %v470
    %v472 = vrot.slane %v439, %v471
    %v473 = vlaneseq
    %v474 = vshrl.u32 %v473, 7
    %v475 = vsub.s32 %v451, %v474
    %v476 = vrot.slane %v441, %v475
    %v477 = vlaneseq
    %v478 = vshrl.u32 %v477, 7
    %v479 = vsub.s32 %v451, %v478
    %v480 = vrot.slane %v443, %v479
    %v481 = vlaneseq
    %v482 = vshrl.u32 %v481, 7
    %v483 = vsub.s32 %v451, %v482
    %v484 = vrot.slane %v445, %v483
    %v485 = vlaneseq
    %v486 = vshrl.u32 %v485, 7
    %v487 = vsub.s32 %v451, %v486
    %v488 = vrot.slane %v447, %v487
    %v489 = vlaneseq
    %v490 = vshrl.u32 %v489, 7
    %v491 = vsub.s32 %v451, %v490
    %v492 = vrot.slane %v449, %v491
    %vm493 = vcmask 1041409
    %v494 = vsel %vm493, %v468, %v464
    %vm495 = vcmask 1042434
    %v496 = vsel %vm495, %v472, %v494
    %vm497 = vcmask 1043459
    %v498 = vsel %vm497, %v476, %v496
    %vm499 = vcmask 1044484
    %v500 = vsel %vm499, %v480, %v498
    %vm501 = vcmask 1045509
    %v502 = vsel %vm501, %v484, %v500
    %vm503 = vcmask 1046534
    %v504 = vsel %vm503, %v488, %v502
    %vm505 = vcmask 1047559
    %v506 = vsel %vm505, %v492, %v504
    %v508 = vsel %vm452, %v506, -1e+30
    %vm509 = vcmask 64512
    %v510 = vsel %vm509, %v508, -inf
    %511 = vmax.xlane.f32.xlu0 %v510
    %v512 = vpop.xlane.xlu0 %511
    %v513 = vsub.f32 %v508, %v512
    %v514 = vmul.f32 %v513, 1.442695
    %v515 = vpow.pop %v514
    %v516 = vsel %vm509, %v515, 0.0
    %517 = vadd.xlane.f32.xlu0 %v516
    %v518 = vpop.xlane.xlu0 %517
    %v519 = vrcp.pop %v518
    %v520 = vmul.f32 %v515, %v519
    %v521 = vlaneseq
    %v522 = vshrl.u32 %v521, 7
    %v523 = vsub.s32 0, %v522
    %v524 = vrot.slane %v520, %v523
    %526 = vbcast.lane.b32.xlu0 %v524, 256
    %v527 = vpop.permute.xlu0 %526
    %v528 = vlaneseq
    %v529 = vshrl.u32 %v528, 7
    %v530 = vsub.s32 1, %v529
    %v531 = vrot.slane %v520, %v530
    %533 = vbcast.lane.b32.xlu0 %v531, 256
    %v534 = vpop.permute.xlu0 %533
    %v535 = vlaneseq
    %v536 = vshrl.u32 %v535, 7
    %v537 = vsub.s32 2, %v536
    %v538 = vrot.slane %v520, %v537
    %540 = vbcast.lane.b32.xlu0 %v538, 256
    %v541 = vpop.permute.xlu0 %540
    %v542 = vlaneseq
    %v543 = vshrl.u32 %v542, 7
    %v544 = vsub.s32 3, %v543
    %v545 = vrot.slane %v520, %v544
    %547 = vbcast.lane.b32.xlu0 %v545, 256
    %v548 = vpop.permute.xlu0 %547
    %v549 = vlaneseq
    %v550 = vshrl.u32 %v549, 7
    %v551 = vsub.s32 4, %v550
    %v552 = vrot.slane %v520, %v551
    %554 = vbcast.lane.b32.xlu0 %v552, 256
    %v555 = vpop.permute.xlu0 %554
    %v556 = vlaneseq
    %v557 = vshrl.u32 %v556, 7
    %v558 = vsub.s32 5, %v557
    %v559 = vrot.slane %v520, %v558
    %561 = vbcast.lane.b32.xlu0 %v559, 256
    %v562 = vpop.permute.xlu0 %561
    %v563 = vlaneseq
    %v564 = vshrl.u32 %v563, 7
    %v565 = vsub.s32 6, %v564
    %v566 = vrot.slane %v520, %v565
    %568 = vbcast.lane.b32.xlu0 %v566, 256
    %v569 = vpop.permute.xlu0 %568
    %v570 = vlaneseq
    %v571 = vshrl.u32 %v570, 7
    %v572 = vsub.s32 7, %v571
    %v573 = vrot.slane %v520, %v572
    %575 = vbcast.lane.b32.xlu0 %v573, 256
    %v576 = vpop.permute.xlu0 %575
    %v577 = vmul.f32 %v527, %v84
    %v578 = vmul.f32 %v534, %v85
    %v579 = vmul.f32 %v541, %v86
    %v580 = vmul.f32 %v548, %v87
    %v581 = vmul.f32 %v555, %v88
    %v582 = vmul.f32 %v562, %v89
    %v583 = vmul.f32 %v569, %v90
    %v584 = vmul.f32 %v576, %v91
    %v585 = vrot.slane %v577, 4
    %v586 = vadd.f32 %v577, %v585
    %v587 = vrot.slane %v586, 2
    %v588 = vadd.f32 %v586, %v587
    %v589 = vrot.slane %v588, 1
    %v590 = vadd.f32 %v588, %v589
    %v591 = vrot.slane %v578, 4
    %v592 = vadd.f32 %v578, %v591
    %v593 = vrot.slane %v592, 2
    %v594 = vadd.f32 %v592, %v593
    %v595 = vrot.slane %v594, 1
    %v596 = vadd.f32 %v594, %v595
    %v597 = vrot.slane %v579, 4
    %v598 = vadd.f32 %v579, %v597
    %v599 = vrot.slane %v598, 2
    %v600 = vadd.f32 %v598, %v599
    %v601 = vrot.slane %v600, 1
    %v602 = vadd.f32 %v600, %v601
    %v603 = vrot.slane %v580, 4
    %v604 = vadd.f32 %v580, %v603
    %v605 = vrot.slane %v604, 2
    %v606 = vadd.f32 %v604, %v605
    %v607 = vrot.slane %v606, 1
    %v608 = vadd.f32 %v606, %v607
    %v609 = vrot.slane %v581, 4
    %v610 = vadd.f32 %v581, %v609
    %v611 = vrot.slane %v610, 2
    %v612 = vadd.f32 %v610, %v611
    %v613 = vrot.slane %v612, 1
    %v614 = vadd.f32 %v612, %v613
    %v615 = vrot.slane %v582, 4
    %v616 = vadd.f32 %v582, %v615
    %v617 = vrot.slane %v616, 2
    %v618 = vadd.f32 %v616, %v617
    %v619 = vrot.slane %v618, 1
    %v620 = vadd.f32 %v618, %v619
    %v621 = vrot.slane %v583, 4
    %v622 = vadd.f32 %v583, %v621
    %v623 = vrot.slane %v622, 2
    %v624 = vadd.f32 %v622, %v623
    %v625 = vrot.slane %v624, 1
    %v626 = vadd.f32 %v624, %v625
    %v627 = vrot.slane %v584, 4
    %v628 = vadd.f32 %v584, %v627
    %v629 = vrot.slane %v628, 2
    %v630 = vadd.f32 %v628, %v629
    %v631 = vrot.slane %v630, 1
    %v632 = vadd.f32 %v630, %v631
    %v641 = vsel %vm493, %v596, %v590
    %v642 = vsel %vm495, %v602, %v641
    %v643 = vsel %vm497, %v608, %v642
    %v644 = vsel %vm499, %v614, %v643
    %v645 = vsel %vm501, %v620, %v644
    %v646 = vsel %vm503, %v626, %v645
    %v647 = vsel %vm505, %v632, %v646
    %649 = vst [vmem:[#allocation10] sm:$0xff] %v647
    %650 = vst.msk [vmem:[#allocation11] sm:$0xff] %vm509, %v520
    // Predicated region
    $region46: #{tpu_custom_call.1} parent=1 // pred_check
      _
    $region47: #{tpu_custom_call.1} parent=1 // pred_check_branch
      %652 = sbr.rel (0) target = $region49
    $region48: #{tpu_custom_call.1} parent=1 // pred_region
      %s654 = ssub.s32 128, 128
      %655 = vsyncadd [#allocation4], %s654
      %s657 = sshll.u32 [#allocation10], 4
      %s658 = int_to_ptr.vmem [resolvable:$true] %s657
      %660 = dma.vmem_to_hbm [thread:$0]  %s658, 128, %s7, [#allocation4]
    $region49: #{tpu_custom_call.1} parent=1 // pred_fallthru
      _
    // Predicated region
    $region50: #{tpu_custom_call.1} parent=1 // pred_check
      _
    $region51: #{tpu_custom_call.1} parent=1 // pred_check_branch
      %662 = sbr.rel (0) target = $region53
    $region52: #{tpu_custom_call.1} parent=1 // pred_region
      %s664 = ssub.s32 128, 128
      %665 = vsyncadd [#allocation12], %s664
      %s667 = sshll.u32 [#allocation11], 4
      %s668 = int_to_ptr.vmem [resolvable:$true] %s667
      %670 = dma.vmem_to_hbm [thread:$0]  %s668, 128, %s8, [#allocation12]
    $region53: #{tpu_custom_call.1} parent=1 // pred_fallthru
      _
    // Predicated region
    $region54: #{tpu_custom_call.1} parent=1 // pred_check
      _
    $region55: #{tpu_custom_call.1} parent=1 // pred_check_branch
      %672 = sbr.rel (0) target = $region57
    $region56: #{tpu_custom_call.1} parent=1 // pred_region
      %673 = dma.done [#allocation4], 128
    $region57: #{tpu_custom_call.1} parent=1 // pred_fallthru
      _
    // Predicated region
    $region58: #{tpu_custom_call.1} parent=1 // pred_check
      _
    $region59: #{tpu_custom_call.1} parent=1 // pred_check_branch
      %675 = sbr.rel (0) target = $region61
    $region60: #{tpu_custom_call.1} parent=1 // pred_region
      %676 = dma.done [#allocation12], 128
    $region61: #{tpu_custom_call.1} parent=1 // pred_fallthru
      _
    %677 = vsyncpa [#allocation3], 1
    %678 = vsyncpa [#allocation6], 1
    %679 = vsyncpa [#allocation9], 1
    %680 = vsyncpa [#allocation4], 1
    %681 = vsyncpa [#allocation12], 1

// kernel: tpu_custom_call.1
$region0: #{tpu_custom_call.1}
  #allocation0 [shape = 'u32[]', space=smem, size = 0x4, offset = 0x4, fixed_abs, tag = 'smem constant byte address 0x4 - core index']
  #allocation1 [shape = 'u32[144,128]{1,0:T(1,128)}', space=vmem, size = 0x12000, scoped, tag = 'internal scratch']
  %s0 = inlined_call_operand.hbm [shape: f32[8,128], index: 0, kind: input, shape index: {}]
  %s1 = inlined_call_operand.hbm [shape: f32[8,8,128], index: 1, kind: input, shape index: {}]
  %s2 = inlined_call_operand.hbm [shape: f32[128,128], index: 2, kind: input, shape index: {}]
  %s3 = inlined_call_operand.vmem [shape: f32[1,128], index: 3, kind: input, shape index: {}]
  %s4 = inlined_call_operand.hbm [shape: f32[128,128], index: 4, kind: input, shape index: {}]
  %s5 = inlined_call_operand.vmem [shape: f32[1,128], index: 5, kind: input, shape index: {}]
  %s6 = inlined_call_operand.vmem [shape: f32[1,128], index: 6, kind: input, shape index: {}]
  %s7 = inlined_call_operand.hbm [shape: f32[8,128], index: 7, kind: output, shape index: {0}]
  %s8 = inlined_call_operand.hbm [shape: f32[8,8], index: 8, kind: output, shape index: {1}]
  %9 = xla_tuple %s7, %s8
  %s10 = sld [smem:[#allocation0]]
  $region62: #{tpu_custom_call.1} parent=0
    _
  %s12 = ssub.s32 1, %s10
  %s13 = scalar_select 0, %s12, %s10
  $region1: #{tpu_custom_call.1} parent=0
    #allocation2 [shape = 'u8[4096]{0}', space=vmem, size = 0x1000, scoped, tag = 'input window, operand 0, single buffered']
    #allocation3 [shape = 's32[1]{0}', space=sflag, size = 0x4, scoped, tag = 'scoped memory for tpu_custom_call.1']
    #allocation4 [shape = 's32[1]{0}', space=sflag, size = 0x4, scoped, tag = 'scoped memory for tpu_custom_call.1']
    #allocation5 [shape = 'u8[32768]{0}', space=vmem, size = 0x8000, scoped, tag = 'input window, operand 1, single buffered']
    #allocation6 [shape = 's32[1]{0}', space=sflag, size = 0x4, scoped, tag = 'scoped memory for tpu_custom_call.1']
    #allocation7 [shape = 'u8[65536]{0}', space=vmem, size = 0x10000, scoped, tag = 'input window, operand 2, single buffered']
    #allocation8 [shape = 'u8[65536]{0}', space=vmem, size = 0x10000, scoped, tag = 'input window, operand 4, single buffered']
    #allocation9 [shape = 's32[1]{0}', space=sflag, size = 0x4, scoped, tag = 'scoped memory for tpu_custom_call.1']
    #allocation10 [shape = 'u8[4096]{0}', space=vmem, size = 0x1000, scoped, tag = 'output window, operand 0, single buffered']
    #allocation11 [shape = 'u8[4096]{0}', space=vmem, size = 0x1000, scoped, tag = 'output window, operand 1, single buffered']
    #allocation12 [shape = 's32[1]{0}', space=sflag, size = 0x4, scoped, tag = 'scoped memory for tpu_custom_call.1']
    %14 = vsyncpa [#allocation3], 0
    %15 = vsyncpa [#allocation6], 0
    %16 = vsyncpa [#allocation9], 0
    %17 = vsyncpa [#allocation4], 0
    %18 = vsyncpa [#allocation12], 0
    // Predicated region
    $region2: #{tpu_custom_call.1} parent=1 // pred_check
      _
    $region3: #{tpu_custom_call.1} parent=1 // pred_check_branch
      %20 = sbr.rel (0) target = $region5
    $region4: #{tpu_custom_call.1} parent=1 // pred_region
      %s22 = ssub.s32 128, 128
      %23 = vsyncadd [#allocation3], %s22
      %s25 = sshll.u32 [#allocation2], 4
      %s26 = int_to_ptr.vmem [resolvable:$true] %s25
      %28 = dma.hbm_to_vmem [thread:$0]  %s0, 128, %s26, [#allocation3]
    $region5: #{tpu_custom_call.1} parent=1 // pred_fallthru
      _
    // Predicated region
    $region6: #{tpu_custom_call.1} parent=1 // pred_check
      _
    $region7: #{tpu_custom_call.1} parent=1 // pred_check_branch
      %30 = sbr.rel (0) target = $region9
    $region8: #{tpu_custom_call.1} parent=1 // pred_region
      %s32 = ssub.s32 1024, 1024
      %33 = vsyncadd [#allocation6], %s32
      %s34 = sshll.u32 [#allocation5], 4
      %s35 = int_to_ptr.vmem [resolvable:$true] %s34
      %40 = dma.hbm_to_vmem [thread:$0]  %s1, 1024, %s35, [#allocation6], 128, 128, 8
    $region9: #{tpu_custom_call.1} parent=1 // pred_fallthru
      _
    // Predicated region
    $region10: #{tpu_custom_call.1} parent=1 // pred_check
      _
    $region11: #{tpu_custom_call.1} parent=1 // pred_check_branch
      %42 = sbr.rel (0) target = $region13
    $region12: #{tpu_custom_call.1} parent=1 // pred_region
      %s44 = ssub.s32 2048, 2048
      %45 = vsyncadd [#allocation6], %s44
      %s46 = sshll.u32 [#allocation7], 4
      %s47 = int_to_ptr.vmem [resolvable:$true] %s46
      %52 = dma.hbm_to_vmem [thread:$0]  %s2, 2048, %s47, [#allocation6], 128, 128, 8
    $region13: #{tpu_custom_call.1} parent=1 // pred_fallthru
      _
    // Predicated region
    $region14: #{tpu_custom_call.1} parent=1 // pred_check
      _
    $region15: #{tpu_custom_call.1} parent=1 // pred_check_branch
      %54 = sbr.rel (0) target = $region17
    $region16: #{tpu_custom_call.1} parent=1 // pred_region
      _
    $region17: #{tpu_custom_call.1} parent=1 // pred_fallthru
      _
    // Predicated region
    $region18: #{tpu_custom_call.1} parent=1 // pred_check
      _
    $region19: #{tpu_custom_call.1} parent=1 // pred_check_branch
      %56 = sbr.rel (0) target = $region21
    $region20: #{tpu_custom_call.1} parent=1 // pred_region
      %s58 = ssub.s32 2048, 2048
      %59 = vsyncadd [#allocation9], %s58
      %s60 = sshll.u32 [#allocation8], 4
      %s61 = int_to_ptr.vmem [resolvable:$true] %s60
      %66 = dma.hbm_to_vmem [thread:$0]  %s4, 2048, %s61, [#allocation9], 128, 128, 8
    $region21: #{tpu_custom_call.1} parent=1 // pred_fallthru
      _
    // Predicated region
    $region22: #{tpu_custom_call.1} parent=1 // pred_check
      _
    $region23: #{tpu_custom_call.1} parent=1 // pred_check_branch
      %68 = sbr.rel (0) target = $region25
    $region24: #{tpu_custom_call.1} parent=1 // pred_region
      _
    $region25: #{tpu_custom_call.1} parent=1 // pred_fallthru
      _
    // Predicated region
    $region26: #{tpu_custom_call.1} parent=1 // pred_check
      _
    $region27: #{tpu_custom_call.1} parent=1 // pred_check_branch
      %70 = sbr.rel (0) target = $region29
    $region28: #{tpu_custom_call.1} parent=1 // pred_region
      _
    $region29: #{tpu_custom_call.1} parent=1 // pred_fallthru
      _
    // Predicated region
    $region30: #{tpu_custom_call.1} parent=1 // pred_check
      _
    $region31: #{tpu_custom_call.1} parent=1 // pred_check_branch
      %72 = sbr.rel (0) target = $region33
    $region32: #{tpu_custom_call.1} parent=1 // pred_region
      %73 = dma.done [#allocation3], 128
    $region33: #{tpu_custom_call.1} parent=1 // pred_fallthru
      _
    // Predicated region
    $region34: #{tpu_custom_call.1} parent=1 // pred_check
      _
    $region35: #{tpu_custom_call.1} parent=1 // pred_check_branch
      %75 = sbr.rel (0) target = $region37
    $region36: #{tpu_custom_call.1} parent=1 // pred_region
      %76 = dma.done [#allocation6], 1024
    $region37: #{tpu_custom_call.1} parent=1 // pred_fallthru
      _
    // Predicated region
    $region38: #{tpu_custom_call.1} parent=1 // pred_check
      _
    $region39: #{tpu_custom_call.1} parent=1 // pred_check_branch
      %78 = sbr.rel (0) target = $region41
    $region40: #{tpu_custom_call.1} parent=1 // pred_region
      %79 = dma.done [#allocation6], 2048
    $region41: #{tpu_custom_call.1} parent=1 // pred_fallthru
      _
    // Predicated region
    $region42: #{tpu_custom_call.1} parent=1 // pred_check
      _
    $region43: #{tpu_custom_call.1} parent=1 // pred_check_branch
      %81 = sbr.rel (0) target = $region45
    $region44: #{tpu_custom_call.1} parent=1 // pred_region
      %82 = dma.done [#allocation9], 2048
    $region45: #{tpu_custom_call.1} parent=1 // pred_fallthru
      _
    %v83 = vld [vmem:[#allocation2] sm:$0xff]
    %v84 = vld [vmem:[#allocation5] sm:$0xff]
    %v85 = vld [vmem:[#allocation5 + $0x8] sm:$0xff]
    %v86 = vld [vmem:[#allocation5 + $0x10] sm:$0xff]
    %v87 = vld [vmem:[#allocation5 + $0x18] sm:$0xff]
    %v88 = vld [vmem:[#allocation5 + $0x20] sm:$0xff]
    %v89 = vld [vmem:[#allocation5 + $0x28] sm:$0xff]
    %v90 = vld [vmem:[#allocation5 + $0x30] sm:$0xff]
    %v91 = vld [vmem:[#allocation5 + $0x38] sm:$0xff]
    %v92 = vld [vmem:[#allocation7] sm:$0xff]
    %v93 = vld [vmem:[#allocation7 + $0x8] sm:$0xff]
    %v94 = vld [vmem:[#allocation7 + $0x10] sm:$0xff]
    %v95 = vld [vmem:[#allocation7 + $0x18] sm:$0xff]
    %v96 = vld [vmem:[#allocation7 + $0x20] sm:$0xff]
    %v97 = vld [vmem:[#allocation7 + $0x28] sm:$0xff]
    %v98 = vld [vmem:[#allocation7 + $0x30] sm:$0xff]
    %v99 = vld [vmem:[#allocation7 + $0x38] sm:$0xff]
    %v100 = vld [vmem:[#allocation7 + $0x40] sm:$0xff]
    %v101 = vld [vmem:[#allocation7 + $0x48] sm:$0xff]
    %v102 = vld [vmem:[#allocation7 + $0x50] sm:$0xff]
    %v103 = vld [vmem:[#allocation7 + $0x58] sm:$0xff]
    %v104 = vld [vmem:[#allocation7 + $0x60] sm:$0xff]
    %v105 = vld [vmem:[#allocation7 + $0x68] sm:$0xff]
    %v106 = vld [vmem:[#allocation7 + $0x70] sm:$0xff]
    %v107 = vld [vmem:[#allocation7 + $0x78] sm:$0xff]
    %v108 = vld [vmem:[%s3] sm:$0x1]
    %v110 = vlaneseq
    %v111 = vshrl.u32 %v110, 7
    %v112 = vsub.s32 0, %v111
    %v113 = vrot.slane %v108, %v112
    %115 = vmatprep.subr.mxu0 0.0
    %116 = vmatpush1.msra.mxu0 %v107
    %117 = vmatprep.subr.mxu0 0.0
    %118 = vmatpush1.msra.mxu0 %v106
    %119 = vmatprep.subr.mxu0 0.0
    %120 = vmatpush1.msra.mxu0 %v105
    %121 = vmatprep.subr.mxu0 0.0
    %122 = vmatpush1.msra.mxu0 %v104
    %123 = vmatprep.subr.mxu0 0.0
    %124 = vmatpush1.msra.mxu0 %v103
    %125 = vmatprep.subr.mxu0 0.0
    %126 = vmatpush1.msra.mxu0 %v102
    %127 = vmatprep.subr.mxu0 0.0
    %128 = vmatpush1.msra.mxu0 %v101
    %129 = vmatprep.subr.mxu0 0.0
    %130 = vmatpush1.msra.mxu0 %v100
    %131 = vmatprep.subr.mxu0 0.0
    %132 = vmatpush1.msra.mxu0 %v99
    %133 = vmatprep.subr.mxu0 0.0
    %134 = vmatpush1.msra.mxu0 %v98
    %135 = vmatprep.subr.mxu0 0.0
    %136 = vmatpush1.msra.mxu0 %v97
    %137 = vmatprep.subr.mxu0 0.0
    %138 = vmatpush1.msra.mxu0 %v96
    %139 = vmatprep.subr.mxu0 0.0
    %140 = vmatpush1.msra.mxu0 %v95
    %141 = vmatprep.subr.mxu0 0.0
    %142 = vmatpush1.msra.mxu0 %v94
    %143 = vmatprep.subr.mxu0 0.0
    %144 = vmatpush1.msra.mxu0 %v93
    %145 = vmatprep.subr.mxu0 0.0
    %146 = vmatpush1.msra.mxu0 %v92
    %147 = vmatprep.subr.mxu0 0.0
    %148 = vmatpush2.msra.mxu0 0.0
    %149 = vmatprep.subr.mxu0 0.0
    %150 = vmatpush2.msra.mxu0 0.0
    %151 = vmatprep.subr.mxu0 0.0
    %152 = vmatpush2.msra.mxu0 0.0
    %153 = vmatprep.subr.mxu0 0.0
    %154 = vmatpush2.msra.mxu0 0.0
    %155 = vmatprep.subr.mxu0 0.0
    %156 = vmatpush2.msra.mxu0 0.0
    %157 = vmatprep.subr.mxu0 0.0
    %158 = vmatpush2.msra.mxu0 0.0
    %159 = vmatprep.subr.mxu0 0.0
    %160 = vmatpush2.msra.mxu0 0.0
    %161 = vmatprep.subr.mxu0 0.0
    %162 = vmatpush2.msra.mxu0 0.0
    %163 = vmatprep.subr.mxu0 0.0
    %164 = vmatpush2.msra.mxu0 0.0
    %165 = vmatprep.subr.mxu0 0.0
    %166 = vmatpush2.msra.mxu0 0.0
    %167 = vmatprep.subr.mxu0 0.0
    %168 = vmatpush2.msra.mxu0 0.0
    %169 = vmatprep.subr.mxu0 0.0
    %170 = vmatpush2.msra.mxu0 0.0
    %171 = vmatprep.subr.mxu0 0.0
    %172 = vmatpush2.msra.mxu0 0.0
    %173 = vmatprep.subr.mxu0 0.0
    %174 = vmatpush2.msra.mxu0 0.0
    %175 = vmatprep.subr.mxu0 0.0
    %176 = vmatpush2.msra.mxu0 0.0
    %177 = vmatprep.subr.mxu0 0.0
    %178 = vmatpush2.msra.mxu0 0.0
    %179 = vmatprep.mubr.f32.mxu0 0.0
    %180 = vmatmul.mubr.f32.gmra.mxu0 %v83
    %v181 = vpop.f32.mrf.mxu0
    %v182 = vadd.f32 %v113, %v181
    %v183 = vpop.f32.mrf.mxu0
    %184 = vdwg.mxu0
    %v185 = vld [vmem:[#allocation8] sm:$0xff]
    %v186 = vld [vmem:[#allocation8 + $0x8] sm:$0xff]
    %v187 = vld [vmem:[#allocation8 + $0x10] sm:$0xff]
    %v188 = vld [vmem:[#allocation8 + $0x18] sm:$0xff]
    %v189 = vld [vmem:[#allocation8 + $0x20] sm:$0xff]
    %v190 = vld [vmem:[#allocation8 + $0x28] sm:$0xff]
    %v191 = vld [vmem:[#allocation8 + $0x30] sm:$0xff]
    %v192 = vld [vmem:[#allocation8 + $0x38] sm:$0xff]
    %v193 = vld [vmem:[#allocation8 + $0x40] sm:$0xff]
    %v194 = vld [vmem:[#allocation8 + $0x48] sm:$0xff]
    %v195 = vld [vmem:[#allocation8 + $0x50] sm:$0xff]
    %v196 = vld [vmem:[#allocation8 + $0x58] sm:$0xff]
    %v197 = vld [vmem:[#allocation8 + $0x60] sm:$0xff]
    %v198 = vld [vmem:[#allocation8 + $0x68] sm:$0xff]
    %v199 = vld [vmem:[#allocation8 + $0x70] sm:$0xff]
    %v200 = vld [vmem:[#allocation8 + $0x78] sm:$0xff]
    %v201 = vld [vmem:[%s5] sm:$0x1]
    %v203 = vlaneseq
    %v204 = vshrl.u32 %v203, 7
    %v205 = vsub.s32 0, %v204
    %v206 = vrot.slane %v201, %v205
    %208 = vmatprep.subr.mxu0 0.0
    %209 = vmatpush1.msra.mxu0 %v200
    %210 = vmatprep.subr.mxu0 0.0
    %211 = vmatpush1.msra.mxu0 %v199
    %212 = vmatprep.subr.mxu0 0.0
    %213 = vmatpush1.msra.mxu0 %v198
    %214 = vmatprep.subr.mxu0 0.0
    %215 = vmatpush1.msra.mxu0 %v197
    %216 = vmatprep.subr.mxu0 0.0
    %217 = vmatpush1.msra.mxu0 %v196
    %218 = vmatprep.subr.mxu0 0.0
    %219 = vmatpush1.msra.mxu0 %v195
    %220 = vmatprep.subr.mxu0 0.0
    %221 = vmatpush1.msra.mxu0 %v194
    %222 = vmatprep.subr.mxu0 0.0
    %223 = vmatpush1.msra.mxu0 %v193
    %224 = vmatprep.subr.mxu0 0.0
    %225 = vmatpush1.msra.mxu0 %v192
    %226 = vmatprep.subr.mxu0 0.0
    %227 = vmatpush1.msra.mxu0 %v191
    %228 = vmatprep.subr.mxu0 0.0
    %229 = vmatpush1.msra.mxu0 %v190
    %230 = vmatprep.subr.mxu0 0.0
    %231 = vmatpush1.msra.mxu0 %v189
    %232 = vmatprep.subr.mxu0 0.0
    %233 = vmatpush1.msra.mxu0 %v188
    %234 = vmatprep.subr.mxu0 0.0
    %235 = vmatpush1.msra.mxu0 %v187
    %236 = vmatprep.subr.mxu0 0.0
    %237 = vmatpush1.msra.mxu0 %v186
    %238 = vmatprep.subr.mxu0 0.0
    %239 = vmatpush1.msra.mxu0 %v185
    %240 = vmatprep.subr.mxu0 0.0
    %241 = vmatpush2.msra.mxu0 0.0
    %242 = vmatprep.subr.mxu0 0.0
    %243 = vmatpush2.msra.mxu0 0.0
    %244 = vmatprep.subr.mxu0 0.0
    %245 = vmatpush2.msra.mxu0 0.0
    %246 = vmatprep.subr.mxu0 0.0
    %247 = vmatpush2.msra.mxu0 0.0
    %248 = vmatprep.subr.mxu0 0.0
    %249 = vmatpush2.msra.mxu0 0.0
    %250 = vmatprep.subr.mxu0 0.0
    %251 = vmatpush2.msra.mxu0 0.0
    %252 = vmatprep.subr.mxu0 0.0
    %253 = vmatpush2.msra.mxu0 0.0
    %254 = vmatprep.subr.mxu0 0.0
    %255 = vmatpush2.msra.mxu0 0.0
    %256 = vmatprep.subr.mxu0 0.0
    %257 = vmatpush2.msra.mxu0 0.0
    %258 = vmatprep.subr.mxu0 0.0
    %259 = vmatpush2.msra.mxu0 0.0
    %260 = vmatprep.subr.mxu0 0.0
    %261 = vmatpush2.msra.mxu0 0.0
    %262 = vmatprep.subr.mxu0 0.0
    %263 = vmatpush2.msra.mxu0 0.0
    %264 = vmatprep.subr.mxu0 0.0
    %265 = vmatpush2.msra.mxu0 0.0
    %266 = vmatprep.subr.mxu0 0.0
    %267 = vmatpush2.msra.mxu0 0.0
    %268 = vmatprep.subr.mxu0 0.0
    %269 = vmatpush2.msra.mxu0 0.0
    %270 = vmatprep.subr.mxu0 0.0
    %271 = vmatpush2.msra.mxu0 0.0
    %272 = vmatprep.mubr.f32.mxu0 0.0
    %273 = vmatmul.mubr.f32.gmra.mxu0 %v84
    %v274 = vpop.f32.mrf.mxu0
    %v275 = vadd.f32 %v206, %v274
    %v276 = vpop.f32.mrf.mxu0
    %277 = vmatprep.mubr.f32.mxu0 0.0
    %278 = vmatmul.mubr.f32.gmra.mxu0 %v85
    %v279 = vpop.f32.mrf.mxu0
    %v280 = vadd.f32 %v206, %v279
    %v281 = vpop.f32.mrf.mxu0
    %282 = vmatprep.mubr.f32.mxu0 0.0
    %283 = vmatmul.mubr.f32.gmra.mxu0 %v86
    %v284 = vpop.f32.mrf.mxu0
    %v285 = vadd.f32 %v206, %v284
    %v286 = vpop.f32.mrf.mxu0
    %287 = vmatprep.mubr.f32.mxu0 0.0
    %288 = vmatmul.mubr.f32.gmra.mxu0 %v87
    %v289 = vpop.f32.mrf.mxu0
    %v290 = vadd.f32 %v206, %v289
    %v291 = vpop.f32.mrf.mxu0
    %292 = vmatprep.mubr.f32.mxu0 0.0
    %293 = vmatmul.mubr.f32.gmra.mxu0 %v88
    %v294 = vpop.f32.mrf.mxu0
    %v295 = vadd.f32 %v206, %v294
    %v296 = vpop.f32.mrf.mxu0
    %297 = vmatprep.mubr.f32.mxu0 0.0
    %298 = vmatmul.mubr.f32.gmra.mxu0 %v89
    %v299 = vpop.f32.mrf.mxu0
    %v300 = vadd.f32 %v206, %v299
    %v301 = vpop.f32.mrf.mxu0
    %302 = vmatprep.mubr.f32.mxu0 0.0
    %303 = vmatmul.mubr.f32.gmra.mxu0 %v90
    %v304 = vpop.f32.mrf.mxu0
    %v305 = vadd.f32 %v206, %v304
    %v306 = vpop.f32.mrf.mxu0
    %307 = vmatprep.mubr.f32.mxu0 0.0
    %308 = vmatmul.mubr.f32.gmra.mxu0 %v91
    %v309 = vpop.f32.mrf.mxu0
    %v310 = vadd.f32 %v206, %v309
    %v311 = vpop.f32.mrf.mxu0
    %312 = vdwg.mxu0
    %v314 = vcombine.high %v182, %v182
    %v316 = vunpack.c.l.s4 1966171168
    %v317 = vunpack.c.0.s8 %v316
    %v318 = vlaneseq
    %v319 = vshrl.u32 %v318, 7
    %v320 = vsub.s32 %v317, %v319
    %v321 = vrot.slane %v182, %v320
    %v323 = vunpack.c.l.s4 1966171168
    %v324 = vunpack.c.0.s8 %v323
    %v325 = vlaneseq
    %v326 = vshrl.u32 %v325, 7
    %v327 = vsub.s32 %v324, %v326
    %v328 = vrot.slane %v314, %v327
    %v329 = vcombine.high %v321, %v321
    %v330 = vcombine.high %v328, %v328
    %v332 = vunpack.c.l.s4 1966171168
    %v333 = vunpack.c.0.s8 %v332
    %v334 = vlaneseq
    %v335 = vshrl.u32 %v334, 7
    %v336 = vsub.s32 %v333, %v335
    %v337 = vrot.slane %v321, %v336
    %v339 = vunpack.c.l.s4 1966171168
    %v340 = vunpack.c.0.s8 %v339
    %v341 = vlaneseq
    %v342 = vshrl.u32 %v341, 7
    %v343 = vsub.s32 %v340, %v342
    %v344 = vrot.slane %v328, %v343
    %v346 = vunpack.c.l.s4 1966171168
    %v347 = vunpack.c.0.s8 %v346
    %v348 = vlaneseq
    %v349 = vshrl.u32 %v348, 7
    %v350 = vsub.s32 %v347, %v349
    %v351 = vrot.slane %v329, %v350
    %v353 = vunpack.c.l.s4 1966171168
    %v354 = vunpack.c.0.s8 %v353
    %v355 = vlaneseq
    %v356 = vshrl.u32 %v355, 7
    %v357 = vsub.s32 %v354, %v356
    %v358 = vrot.slane %v330, %v357
    %v359 = vcombine.high %v337, %v337
    %v360 = vcombine.high %v344, %v344
    %v361 = vcombine.high %v351, %v351
    %v362 = vcombine.high %v358, %v358
    %v363 = vlaneseq
    %v364 = vshrl.u32 %v363, 7
    %v365 = vsub.s32 0, %v364
    %v366 = vrot.slane %v337, %v365
    %v367 = vlaneseq
    %v368 = vshrl.u32 %v367, 7
    %v369 = vsub.s32 0, %v368
    %v370 = vrot.slane %v351, %v369
    %v371 = vlaneseq
    %v372 = vshrl.u32 %v371, 7
    %v373 = vsub.s32 0, %v372
    %v374 = vrot.slane %v359, %v373
    %v375 = vlaneseq
    %v376 = vshrl.u32 %v375, 7
    %v377 = vsub.s32 0, %v376
    %v378 = vrot.slane %v361, %v377
    %v379 = vlaneseq
    %v380 = vshrl.u32 %v379, 7
    %v381 = vsub.s32 0, %v380
    %v382 = vrot.slane %v344, %v381
    %v383 = vlaneseq
    %v384 = vshrl.u32 %v383, 7
    %v385 = vsub.s32 0, %v384
    %v386 = vrot.slane %v358, %v385
    %v387 = vlaneseq
    %v388 = vshrl.u32 %v387, 7
    %v389 = vsub.s32 0, %v388
    %v390 = vrot.slane %v360, %v389
    %v391 = vlaneseq
    %v392 = vshrl.u32 %v391, 7
    %v393 = vsub.s32 0, %v392
    %v394 = vrot.slane %v362, %v393
    %v403 = vadd.f32 %v366, %v275
    %v404 = vadd.f32 %v370, %v280
    %v405 = vadd.f32 %v374, %v285
    %v406 = vadd.f32 %v378, %v290
    %v407 = vadd.f32 %v382, %v295
    %v408 = vadd.f32 %v386, %v300
    %v409 = vadd.f32 %v390, %v305
    %v410 = vadd.f32 %v394, %v310
    %v411 = vtanh.pop %v403
    %v412 = vtanh.pop %v404
    %v413 = vtanh.pop %v405
    %v414 = vtanh.pop %v406
    %v415 = vtanh.pop %v407
    %v416 = vtanh.pop %v408
    %v417 = vtanh.pop %v409
    %v418 = vtanh.pop %v410
    %v419 = vld [vmem:[%s6] sm:$0x1]
    %v421 = vlaneseq
    %v422 = vshrl.u32 %v421, 7
    %v423 = vsub.s32 0, %v422
    %v424 = vrot.slane %v419, %v423
    %v426 = vmul.f32 %v411, %v424
    %v427 = vmul.f32 %v412, %v424
    %v428 = vmul.f32 %v413, %v424
    %v429 = vmul.f32 %v414, %v424
    %v430 = vmul.f32 %v415, %v424
    %v431 = vmul.f32 %v416, %v424
    %v432 = vmul.f32 %v417, %v424
    %v433 = vmul.f32 %v418, %v424
    %434 = vadd.xlane.f32.xlu0 %v426
    %v435 = vpop.xlane.xlu0 %434
    %436 = vadd.xlane.f32.xlu0 %v427
    %v437 = vpop.xlane.xlu0 %436
    %438 = vadd.xlane.f32.xlu0 %v428
    %v439 = vpop.xlane.xlu0 %438
    %440 = vadd.xlane.f32.xlu0 %v429
    %v441 = vpop.xlane.xlu0 %440
    %442 = vadd.xlane.f32.xlu0 %v430
    %v443 = vpop.xlane.xlu0 %442
    %444 = vadd.xlane.f32.xlu0 %v431
    %v445 = vpop.xlane.xlu0 %444
    %446 = vadd.xlane.f32.xlu0 %v432
    %v447 = vpop.xlane.xlu0 %446
    %448 = vadd.xlane.f32.xlu0 %v433
    %v449 = vpop.xlane.xlu0 %448
    %v450 = vlaneseq
    %v451 = vand.u32 %v450, 127
    %vm452 = vcmp.lt.s32.totalorder %v451, 8
    %v461 = vlaneseq
    %v462 = vshrl.u32 %v461, 7
    %v463 = vsub.s32 %v451, %v462
    %v464 = vrot.slane %v435, %v463
    %v465 = vlaneseq
    %v466 = vshrl.u32 %v465, 7
    %v467 = vsub.s32 %v451, %v466
    %v468 = vrot.slane %v437, %v467
    %v469 = vlaneseq
    %v470 = vshrl.u32 %v469, 7
    %v471 = vsub.s32 %v451, %v470
    %v472 = vrot.slane %v439, %v471
    %v473 = vlaneseq
    %v474 = vshrl.u32 %v473, 7
    %v475 = vsub.s32 %v451, %v474
    %v476 = vrot.slane %v441, %v475
    %v477 = vlaneseq
    %v478 = vshrl.u32 %v477, 7
    %v479 = vsub.s32 %v451, %v478
    %v480 = vrot.slane %v443, %v479
    %v481 = vlaneseq
    %v482 = vshrl.u32 %v481, 7
    %v483 = vsub.s32 %v451, %v482
    %v484 = vrot.slane %v445, %v483
    %v485 = vlaneseq
    %v486 = vshrl.u32 %v485, 7
    %v487 = vsub.s32 %v451, %v486
    %v488 = vrot.slane %v447, %v487
    %v489 = vlaneseq
    %v490 = vshrl.u32 %v489, 7
    %v491 = vsub.s32 %v451, %v490
    %v492 = vrot.slane %v449, %v491
    %vm493 = vcmask 1041409
    %v494 = vsel %vm493, %v468, %v464
    %vm495 = vcmask 1042434
    %v496 = vsel %vm495, %v472, %v494
    %vm497 = vcmask 1043459
    %v498 = vsel %vm497, %v476, %v496
    %vm499 = vcmask 1044484
    %v500 = vsel %vm499, %v480, %v498
    %vm501 = vcmask 1045509
    %v502 = vsel %vm501, %v484, %v500
    %vm503 = vcmask 1046534
    %v504 = vsel %vm503, %v488, %v502
    %vm505 = vcmask 1047559
    %v506 = vsel %vm505, %v492, %v504
    %v508 = vsel %vm452, %v506, -1e+30
    %vm509 = vcmask 64512
    %v510 = vsel %vm509, %v508, -inf
    %511 = vmax.xlane.f32.xlu0 %v510
    %v512 = vpop.xlane.xlu0 %511
    %v513 = vsub.f32 %v508, %v512
    %v514 = vmul.f32 %v513, 1.442695
    %v515 = vpow.pop %v514
    %v516 = vsel %vm509, %v515, 0.0
    %517 = vadd.xlane.f32.xlu0 %v516
    %v518 = vpop.xlane.xlu0 %517
    %v519 = vrcp.pop %v518
    %v520 = vmul.f32 %v515, %v519
    %v521 = vlaneseq
    %v522 = vshrl.u32 %v521, 7
    %v523 = vsub.s32 0, %v522
    %v524 = vrot.slane %v520, %v523
    %526 = vbcast.lane.b32.xlu0 %v524, 256
    %v527 = vpop.permute.xlu0 %526
    %v528 = vlaneseq
    %v529 = vshrl.u32 %v528, 7
    %v530 = vsub.s32 1, %v529
    %v531 = vrot.slane %v520, %v530
    %533 = vbcast.lane.b32.xlu0 %v531, 256
    %v534 = vpop.permute.xlu0 %533
    %v535 = vlaneseq
    %v536 = vshrl.u32 %v535, 7
    %v537 = vsub.s32 2, %v536
    %v538 = vrot.slane %v520, %v537
    %540 = vbcast.lane.b32.xlu0 %v538, 256
    %v541 = vpop.permute.xlu0 %540
    %v542 = vlaneseq
    %v543 = vshrl.u32 %v542, 7
    %v544 = vsub.s32 3, %v543
    %v545 = vrot.slane %v520, %v544
    %547 = vbcast.lane.b32.xlu0 %v545, 256
    %v548 = vpop.permute.xlu0 %547
    %v549 = vlaneseq
    %v550 = vshrl.u32 %v549, 7
    %v551 = vsub.s32 4, %v550
    %v552 = vrot.slane %v520, %v551
    %554 = vbcast.lane.b32.xlu0 %v552, 256
    %v555 = vpop.permute.xlu0 %554
    %v556 = vlaneseq
    %v557 = vshrl.u32 %v556, 7
    %v558 = vsub.s32 5, %v557
    %v559 = vrot.slane %v520, %v558
    %561 = vbcast.lane.b32.xlu0 %v559, 256
    %v562 = vpop.permute.xlu0 %561
    %v563 = vlaneseq
    %v564 = vshrl.u32 %v563, 7
    %v565 = vsub.s32 6, %v564
    %v566 = vrot.slane %v520, %v565
    %568 = vbcast.lane.b32.xlu0 %v566, 256
    %v569 = vpop.permute.xlu0 %568
    %v570 = vlaneseq
    %v571 = vshrl.u32 %v570, 7
    %v572 = vsub.s32 7, %v571
    %v573 = vrot.slane %v520, %v572
    %575 = vbcast.lane.b32.xlu0 %v573, 256
    %v576 = vpop.permute.xlu0 %575
    %v577 = vmul.f32 %v527, %v84
    %v578 = vmul.f32 %v534, %v85
    %v579 = vmul.f32 %v541, %v86
    %v580 = vmul.f32 %v548, %v87
    %v581 = vmul.f32 %v555, %v88
    %v582 = vmul.f32 %v562, %v89
    %v583 = vmul.f32 %v569, %v90
    %v584 = vmul.f32 %v576, %v91
    %v585 = vrot.slane %v577, 4
    %v586 = vadd.f32 %v577, %v585
    %v587 = vrot.slane %v586, 2
    %v588 = vadd.f32 %v586, %v587
    %v589 = vrot.slane %v588, 1
    %v590 = vadd.f32 %v588, %v589
    %v591 = vrot.slane %v578, 4
    %v592 = vadd.f32 %v578, %v591
    %v593 = vrot.slane %v592, 2
    %v594 = vadd.f32 %v592, %v593
    %v595 = vrot.slane %v594, 1
    %v596 = vadd.f32 %v594, %v595
    %v597 = vrot.slane %v579, 4
    %v598 = vadd.f32 %v579, %v597
    %v599 = vrot.slane %v598, 2
    %v600 = vadd.f32 %v598, %v599
    %v601 = vrot.slane %v600, 1
    %v602 = vadd.f32 %v600, %v601
    %v603 = vrot.slane %v580, 4
    %v604 = vadd.f32 %v580, %v603
    %v605 = vrot.slane %v604, 2
    %v606 = vadd.f32 %v604, %v605
    %v607 = vrot.slane %v606, 1
    %v608 = vadd.f32 %v606, %v607
    %v609 = vrot.slane %v581, 4
    %v610 = vadd.f32 %v581, %v609
    %v611 = vrot.slane %v610, 2
    %v612 = vadd.f32 %v610, %v611
    %v613 = vrot.slane %v612, 1
    %v614 = vadd.f32 %v612, %v613
    %v615 = vrot.slane %v582, 4
    %v616 = vadd.f32 %v582, %v615
    %v617 = vrot.slane %v616, 2
    %v618 = vadd.f32 %v616, %v617
    %v619 = vrot.slane %v618, 1
    %v620 = vadd.f32 %v618, %v619
    %v621 = vrot.slane %v583, 4
    %v622 = vadd.f32 %v583, %v621
    %v623 = vrot.slane %v622, 2
    %v624 = vadd.f32 %v622, %v623
    %v625 = vrot.slane %v624, 1
    %v626 = vadd.f32 %v624, %v625
    %v627 = vrot.slane %v584, 4
    %v628 = vadd.f32 %v584, %v627
    %v629 = vrot.slane %v628, 2
    %v630 = vadd.f32 %v628, %v629
    %v631 = vrot.slane %v630, 1
    %v632 = vadd.f32 %v630, %v631
    %v641 = vsel %vm493, %v596, %v590
    %v642 = vsel %vm495, %v602, %v641
    %v643 = vsel %vm497, %v608, %v642
    %v644 = vsel %vm499, %v614, %v643
    %v645 = vsel %vm501, %v620, %v644
    %v646 = vsel %vm503, %v626, %v645
    %v647 = vsel %vm505, %v632, %v646
    %649 = vst [vmem:[#allocation10] sm:$0xff] %v647
    %650 = vst.msk [vmem:[#allocation11] sm:$0xff] %vm509, %v520
    // Predicated region
    $region46: #{tpu_custom_call.1} parent=1 // pred_check
      _
    $region47: #{tpu_custom_call.1} parent=1 // pred_check_branch
      %652 = sbr.rel (0) target = $region49
    $region48: #{tpu_custom_call.1} parent=1 // pred_region
      %s654 = ssub.s32 128, 128
      %655 = vsyncadd [#allocation4], %s654
      %s657 = sshll.u32 [#allocation10], 4
      %s658 = int_to_ptr.vmem [resolvable:$true] %s657
      %660 = dma.vmem_to_hbm [thread:$0]  %s658, 128, %s7, [#allocation4]
    $region49: #{tpu_custom_call.1} parent=1 // pred_fallthru
      _
    // Predicated region
    $region50: #{tpu_custom_call.1} parent=1 // pred_check
      _
    $region51: #{tpu_custom_call.1} parent=1 // pred_check_branch
      %662 = sbr.rel (0) target = $region53
    $region52: #{tpu_custom_call.1} parent=1 // pred_region
      %s664 = ssub.s32 128, 128
      %665 = vsyncadd [#allocation12], %s664
      %s667 = sshll.u32 [#allocation11], 4
      %s668 = int_to_ptr.vmem [resolvable:$true] %s667
      %670 = dma.vmem_to_hbm [thread:$0]  %s668, 128, %s8, [#allocation12]
    $region53: #{tpu_custom_call.1} parent=1 // pred_fallthru
      _
    // Predicated region
    $region54: #{tpu_custom_call.1} parent=1 // pred_check
      _
    $region55: #{tpu_custom_call.1} parent=1 // pred_check_branch
      %672 = sbr.rel (0) target = $region57
    $region56: #{tpu_custom_call.1} parent=1 // pred_region
      %673 = dma.done [#allocation4], 128
    $region57: #{tpu_custom_call.1} parent=1 // pred_fallthru
      _
    // Predicated region
    $region58: #{tpu_custom_call.1} parent=1 // pred_check
      _
    $region59: #{tpu_custom_call.1} parent=1 // pred_check_branch
      %675 = sbr.rel (0) target = $region61
    $region60: #{tpu_custom_call.1} parent=1 // pred_region
      %676 = dma.done [#allocation12], 128
    $region61: #{tpu_custom_call.1} parent=1 // pred_fallthru
      _
    %677 = vsyncpa [#allocation3], 1
    %678 = vsyncpa [#allocation6], 1
    %679 = vsyncpa [#allocation9], 1
    %680 = vsyncpa [#allocation4], 1
    %681 = vsyncpa [#allocation12], 1

</llo_original>
